<compile_context>
chip_gen: v6e
topology: v6e:2x2x1
jax: 0.10.0
libtpu: 0.0.40
codegen_flags: <defaults>
</compile_context>

<pallas_src>
import jax
import jax.numpy as jnp
from jax.experimental import pallas as pl
from jax.experimental.pallas import tpu as pltpu

EPS = 1e-5              # BatchNorm2d default eps
LANE = 128
_VMEM_LIMIT = 32 * 1024 * 1024


def _round_up(x, m):
    return (x + m - 1) // m * m


def _pick_row_tile(ho):
    # Largest divisor of Ho that is <= 8: >1 tiles even at tiny test shapes,
    # and several-hundred-row tiles (TR*W positions) at realistic image sizes.
    for d in range(min(ho, 8), 0, -1):
        if ho % d == 0:
            return d
    return 1


def down_forward(x_nchw, w_oihw, bias, gamma, beta, prelu_a):
    """Conv2d(3x3, valid) + BatchNorm2d(training) + PReLU.

    x_nchw: (N, Cin, H, W) f32 -> (N, Cout, H-2, W-2) f32.
    `bias` is accepted for API parity but unused: a per-channel bias added
    before training-mode BatchNorm cancels exactly in (conv - mean).
    """
    del bias
    N, Cin, H, W = x_nchw.shape
    Cout = w_oihw.shape[0]
    Ho, Wo = H - 2, W - 2
    Cp = _round_up(Cout, LANE)           # lane-padded channel dim

    TR = _pick_row_tile(Ho)              # output rows per tile
    nRT = Ho // TR
    NT = N * nRT                         # one grid step per (sample, row-tile)
    PW_OUT = TR * W                      # "extended" output positions per tile
    PW_IN = (TR + 2) * W + 8             # flattened input window (+8 slack rows
                                         #  so the (kh=2,kw=2) tap slice stays in
                                         #  bounds at the invalid tail columns)

    # ---- glue: per-tile input row windows, NHWC, spatially flattened -------
    x_nhwc = jnp.transpose(x_nchw, (0, 2, 3, 1)).astype(jnp.float32)  # (N,H,W,Cin)
    wins = [x_nhwc[:, t * TR: t * TR + TR + 2] for t in range(nRT)]   # (N,TR+2,W,Cin)
    xw = jnp.stack(wins, axis=1).reshape(N * nRT, (TR + 2) * W, Cin)
    xw = jnp.pad(xw, ((0, 0), (0, PW_IN - (TR + 2) * W), (0, 0)))     # (NT,PW_IN,Cin)

    # ---- glue: weights as 9 (Cin, Cp) taps, channel-padded ------------------
    w_taps = jnp.transpose(w_oihw.astype(jnp.float32), (2, 3, 1, 0))  # (3,3,Cin,Cout)
    w_taps = w_taps.reshape(9, Cin, Cout)
    w_taps = jnp.pad(w_taps, ((0, 0), (0, 0), (0, Cp - Cout)))        # (9,Cin,Cp)

    gamma_p = jnp.pad(gamma.astype(jnp.float32), (0, Cp - Cout)).reshape(1, Cp)
    beta_p = jnp.pad(beta.astype(jnp.float32), (0, Cp - Cout)).reshape(1, Cp)
    a_smem = jnp.full((1,), prelu_a, jnp.float32)

    def conv_tile(x_ref, w_ref, acc_ref):
        # 3x3 valid conv of the current window: 9 accumulated MXU matmuls.
        # Accumulator row p = r*W + c holds output position (r, c); columns
        # c in [Wo, W) are junk (masked from the stats, sliced off outside).
        acc_ref[...] = jnp.zeros_like(acc_ref)
        for kh in range(3):
            for kw in range(3):
                off = kh * W + kw                               # static offset
                x_tap = x_ref[off:off + PW_OUT, :]              # (PW_OUT, Cin)
                acc_ref[...] += jnp.dot(x_tap, w_ref[kh * 3 + kw],
                                        preferred_element_type=jnp.float32)
        return acc_ref[...]

    def valid_mask():
        col = jax.lax.broadcasted_iota(jnp.int32, (PW_OUT, Cp), 0) % W
        return col < Wo

    # -------- pass 1: per-channel sum / sum-of-squares over all tiles --------
    def stats_kernel(x_ref, w_ref, sum_ref, sq_ref, acc_ref):
        @pl.when(pl.program_id(0) == 0)
        def _init():
            sum_ref[...] = jnp.zeros_like(sum_ref)
            sq_ref[...] = jnp.zeros_like(sq_ref)

        conv = conv_tile(x_ref, w_ref, acc_ref)
        cz = jnp.where(valid_mask(), conv, 0.0)
        sum_ref[...] += jnp.sum(cz, axis=0, keepdims=True)
        sq_ref[...] += jnp.sum(cz * cz, axis=0, keepdims=True)

    ch_sum, ch_sq = pl.pallas_call(
        stats_kernel,
        out_shape=(jax.ShapeDtypeStruct((1, Cp), jnp.float32),
                   jax.ShapeDtypeStruct((1, Cp), jnp.float32)),
        grid=(NT,),
        in_specs=[
            pl.BlockSpec((None, PW_IN, Cin), lambda m: (m, 0, 0)),
            pl.BlockSpec((9, Cin, Cp), lambda m: (0, 0, 0)),
        ],
        out_specs=(pl.BlockSpec((1, Cp), lambda m: (0, 0)),
                   pl.BlockSpec((1, Cp), lambda m: (0, 0))),
        scratch_shapes=[pltpu.VMEM((PW_OUT, Cp), jnp.float32)],
        compiler_params=pltpu.CompilerParams(
            dimension_semantics=("arbitrary",),      # resident accumulators
            vmem_limit_bytes=_VMEM_LIMIT),
    )(xw, w_taps)

    # ---- fold BN into one per-channel FMA (tiny (1, Cp) math, plain JAX) ----
    m_total = jnp.float32(N * Ho * Wo)
    mean = ch_sum / m_total
    var = jnp.maximum(ch_sq / m_total - mean * mean, 0.0)   # biased (training) var
    scale = gamma_p * jax.lax.rsqrt(var + EPS)
    shift = beta_p - mean * scale

    # -------- pass 2: recompute conv tile, apply BN FMA + PReLU --------------
    def apply_kernel(x_ref, w_ref, scale_ref, shift_ref, a_ref, out_ref, acc_ref):
        conv = conv_tile(x_ref, w_ref, acc_ref)
        y = conv * scale_ref[...] + shift_ref[...]
        a = a_ref[0]                                    # PReLU slope from SMEM
        out_ref[...] = jnp.where(y >= 0.0, y, a * y)

    out_ext = pl.pallas_call(
        apply_kernel,
        out_shape=jax.ShapeDtypeStruct((NT, PW_OUT, Cp), jnp.float32),
        grid=(NT,),
        in_specs=[
            pl.BlockSpec((None, PW_IN, Cin), lambda m: (m, 0, 0)),
            pl.BlockSpec((9, Cin, Cp), lambda m: (0, 0, 0)),
            pl.BlockSpec((1, Cp), lambda m: (0, 0)),
            pl.BlockSpec((1, Cp), lambda m: (0, 0)),
            pl.BlockSpec(memory_space=pltpu.MemorySpace.SMEM),
        ],
        out_specs=pl.BlockSpec((None, PW_OUT, Cp), lambda m: (m, 0, 0)),
        scratch_shapes=[pltpu.VMEM((PW_OUT, Cp), jnp.float32)],
        compiler_params=pltpu.CompilerParams(
            dimension_semantics=("parallel",),          # independent tiles
            vmem_limit_bytes=_VMEM_LIMIT),
    )(xw, w_taps, scale, shift, a_smem)

    # ---- glue: strip channel / column padding, back to NCHW -----------------
    out = out_ext[:, :, :Cout].reshape(N, nRT, TR, W, Cout)
    out = out[:, :, :, :Wo, :].reshape(N, Ho, Wo, Cout)
    return jnp.transpose(out, (0, 3, 1, 2))


def down_reference(x, w, b, gamma, beta, a):
    """Pure-JAX reference of Conv2d+BatchNorm2d(train)+PReLU for validation."""
    conv = jax.lax.conv_general_dilated(
        x, w, window_strides=(1, 1), padding="VALID",
        dimension_numbers=("NCHW", "OIHW", "NCHW"))
    conv = conv + b.reshape(1, -1, 1, 1)
    mean = jnp.mean(conv, axis=(0, 2, 3), keepdims=True)
    var = jnp.mean((conv - mean) ** 2, axis=(0, 2, 3), keepdims=True)
    y = (conv - mean) * jax.lax.rsqrt(var + EPS)
    y = y * gamma.reshape(1, -1, 1, 1) + beta.reshape(1, -1, 1, 1)
    return jnp.where(y >= 0, y, a * y)


if __name__ == "__main__":
    # Small shapes consistent with the module: NCHW input.
    N, Cin, H, W = 2, 4, 16, 16
    Cout = 8

    key = jax.random.PRNGKey(0)
    kx, kw, kb = jax.random.split(key, 3)

    x = jax.random.normal(kx, (N, Cin, H, W), dtype=jnp.float32)
    w = jax.random.normal(kw, (Cout, Cin, 3, 3), dtype=jnp.float32) * 0.1
    b = jax.random.normal(kb, (Cout,), dtype=jnp.float32) * 0.1
    gamma = jnp.ones((Cout,), dtype=jnp.float32)   # BatchNorm2d default weight
    beta = jnp.zeros((Cout,), dtype=jnp.float32)   # BatchNorm2d default bias
    prelu_a = 0.25                                 # PReLU default init

    out = down_forward(x, w, b, gamma, beta, prelu_a)
    out = jax.block_until_ready(out)

    ref = jax.block_until_ready(down_reference(x, w, b, gamma, beta, prelu_a))
    assert out.shape == (N, Cout, H - 2, W - 2)
    assert jnp.allclose(out, ref, atol=1e-3, rtol=1e-3), "mismatch vs reference"

    print("KERNEL_OK")
</pallas_src>

<mosaic_0001>
module attributes {stable_mosaic.version = 11 : i64} {
  func.func @stats_kernel(%arg0: i32, %arg1: memref<1x152x4xf32, #tpu.memory_space<vmem>>, %arg2: memref<9x4x128xf32, #tpu.memory_space<vmem>>, %arg3: memref<1x128xf32, #tpu.memory_space<vmem>>, %arg4: memref<1x128xf32, #tpu.memory_space<vmem>>, %arg5: memref<112x128xf32, #tpu.memory_space<vmem>>) attributes {dimension_semantics = [#tpu.dimension_semantics<arbitrary>], iteration_bounds = array<i64: 4>, scalar_prefetch = 0 : i64, scratch_operands = 1 : i64, tpu.core_type = #tpu.core_type<tc>, window_params = [{transform_indices = @transform_0, window_bounds = array<i64: 1, 152, 4>}, {pipeline_mode = #tpu.pipeline_mode<synchronous>, transform_indices = @transform_1, window_bounds = array<i64: 9, 4, 128>}, {pipeline_mode = #tpu.pipeline_mode<synchronous>, transform_indices = @transform_2, window_bounds = array<i64: 1, 128>}, {pipeline_mode = #tpu.pipeline_mode<synchronous>, transform_indices = @transform_3, window_bounds = array<i64: 1, 128>}]} {
    %c0_i32 = arith.constant 0 : i32
    %0 = arith.cmpi eq, %arg0, %c0_i32 : i32
    %1 = arith.extui %0 : i1 to i32
    %c0_i32_0 = arith.constant 0 : i32
    %2 = arith.cmpi ne, %1, %c0_i32_0 : i32
    scf.if %2 {
      %cst_104 = arith.constant 0.000000e+00 : f32
      %110 = vector.broadcast %cst_104 : f32 to vector<1x128xf32>
      %c0_105 = arith.constant 0 : index
      %c0_106 = arith.constant 0 : index
      %111 = vector.load %arg3[%c0_105, %c0_106] : memref<1x128xf32, #tpu.memory_space<vmem>>, vector<1x128xf32>
      tpu.vector_store %arg3[%c0_105, %c0_106], %110 {strides = array<i32>} : memref<1x128xf32, #tpu.memory_space<vmem>>, vector<1x128xf32>,
      %cst_107 = arith.constant 0.000000e+00 : f32
      %112 = vector.broadcast %cst_107 : f32 to vector<1x128xf32>
      %c0_108 = arith.constant 0 : index
      %c0_109 = arith.constant 0 : index
      %113 = vector.load %arg4[%c0_108, %c0_109] : memref<1x128xf32, #tpu.memory_space<vmem>>, vector<1x128xf32>
      tpu.vector_store %arg4[%c0_108, %c0_109], %112 {strides = array<i32>} : memref<1x128xf32, #tpu.memory_space<vmem>>, vector<1x128xf32>,
    } else {
    }
    %cst = arith.constant 0.000000e+00 : f32
    %3 = vector.broadcast %cst : f32 to vector<112x128xf32>
    %c0 = arith.constant 0 : index
    %c0_1 = arith.constant 0 : index
    %4 = vector.load %arg5[%c0, %c0_1] : memref<112x128xf32, #tpu.memory_space<vmem>>, vector<112x128xf32>
    tpu.vector_store %arg5[%c0, %c0_1], %3 {strides = array<i32>} : memref<112x128xf32, #tpu.memory_space<vmem>>, vector<112x128xf32>,
    %c0_2 = arith.constant 0 : index
    %c0_3 = arith.constant 0 : index
    %c0_4 = arith.constant 0 : index
    %5 = vector.load %arg1[%c0_2, %c0_3, %c0_4] : memref<1x152x4xf32, #tpu.memory_space<vmem>>, vector<1x112x4xf32>
    %6 = vector.shape_cast %5 : vector<1x112x4xf32> to vector<112x4xf32>
    %c0_5 = arith.constant 0 : index
    %c0_6 = arith.constant 0 : index
    %7 = vector.load %arg5[%c0_5, %c0_6] : memref<112x128xf32, #tpu.memory_space<vmem>>, vector<112x128xf32>
    %c0_7 = arith.constant 0 : index
    %c0_8 = arith.constant 0 : index
    %c0_9 = arith.constant 0 : index
    %8 = vector.load %arg2[%c0_7, %c0_8, %c0_9] : memref<9x4x128xf32, #tpu.memory_space<vmem>>, vector<1x4x128xf32>
    %9 = vector.shape_cast %8 : vector<1x4x128xf32> to vector<4x128xf32>
    %cst_10 = arith.constant dense<0.000000e+00> : vector<112x128xf32>
    %10 = tpu.matmul %6, %9, %cst_10 {dimension_numbers = #tpu.dot_dimension_numbers<[1], [0], [0], [1], [0, 0, 1, 1], [], []>} : vector<112x4xf32>, vector<4x128xf32>, vector<112x128xf32> -> vector<112x128xf32>
    %11 = arith.addf %7, %10 : vector<112x128xf32>
    %c0_11 = arith.constant 0 : index
    %c0_12 = arith.constant 0 : index
    %12 = vector.load %arg5[%c0_11, %c0_12] : memref<112x128xf32, #tpu.memory_space<vmem>>, vector<112x128xf32>
    tpu.vector_store %arg5[%c0_11, %c0_12], %11 {strides = array<i32>} : memref<112x128xf32, #tpu.memory_space<vmem>>, vector<112x128xf32>,
    %c0_13 = arith.constant 0 : index
    %c1 = arith.constant 1 : index
    %c0_14 = arith.constant 0 : index
    %13 = vector.load %arg1[%c0_13, %c1, %c0_14] : memref<1x152x4xf32, #tpu.memory_space<vmem>>, vector<1x112x4xf32>
    %14 = vector.shape_cast %13 : vector<1x112x4xf32> to vector<112x4xf32>
    %c0_15 = arith.constant 0 : index
    %c0_16 = arith.constant 0 : index
    %15 = vector.load %arg5[%c0_15, %c0_16] : memref<112x128xf32, #tpu.memory_space<vmem>>, vector<112x128xf32>
    %c1_17 = arith.constant 1 : index
    %c0_18 = arith.constant 0 : index
    %c0_19 = arith.constant 0 : index
    %16 = vector.load %arg2[%c1_17, %c0_18, %c0_19] : memref<9x4x128xf32, #tpu.memory_space<vmem>>, vector<1x4x128xf32>
    %17 = vector.shape_cast %16 : vector<1x4x128xf32> to vector<4x128xf32>
    %cst_20 = arith.constant dense<0.000000e+00> : vector<112x128xf32>
    %18 = tpu.matmul %14, %17, %cst_20 {dimension_numbers = #tpu.dot_dimension_numbers<[1], [0], [0], [1], [0, 0, 1, 1], [], []>} : vector<112x4xf32>, vector<4x128xf32>, vector<112x128xf32> -> vector<112x128xf32>
    %19 = arith.addf %15, %18 : vector<112x128xf32>
    %c0_21 = arith.constant 0 : index
    %c0_22 = arith.constant 0 : index
    %20 = vector.load %arg5[%c0_21, %c0_22] : memref<112x128xf32, #tpu.memory_space<vmem>>, vector<112x128xf32>
    tpu.vector_store %arg5[%c0_21, %c0_22], %19 {strides = array<i32>} : memref<112x128xf32, #tpu.memory_space<vmem>>, vector<112x128xf32>,
    %c0_23 = arith.constant 0 : index
    %c2 = arith.constant 2 : index
    %c0_24 = arith.constant 0 : index
    %21 = vector.load %arg1[%c0_23, %c2, %c0_24] : memref<1x152x4xf32, #tpu.memory_space<vmem>>, vector<1x112x4xf32>
    %22 = vector.shape_cast %21 : vector<1x112x4xf32> to vector<112x4xf32>
    %c0_25 = arith.constant 0 : index
    %c0_26 = arith.constant 0 : index
    %23 = vector.load %arg5[%c0_25, %c0_26] : memref<112x128xf32, #tpu.memory_space<vmem>>, vector<112x128xf32>
    %c2_27 = arith.constant 2 : index
    %c0_28 = arith.constant 0 : index
    %c0_29 = arith.constant 0 : index
    %24 = vector.load %arg2[%c2_27, %c0_28, %c0_29] : memref<9x4x128xf32, #tpu.memory_space<vmem>>, vector<1x4x128xf32>
    %25 = vector.shape_cast %24 : vector<1x4x128xf32> to vector<4x128xf32>
    %cst_30 = arith.constant dense<0.000000e+00> : vector<112x128xf32>
    %26 = tpu.matmul %22, %25, %cst_30 {dimension_numbers = #tpu.dot_dimension_numbers<[1], [0], [0], [1], [0, 0, 1, 1], [], []>} : vector<112x4xf32>, vector<4x128xf32>, vector<112x128xf32> -> vector<112x128xf32>
    %27 = arith.addf %23, %26 : vector<112x128xf32>
    %c0_31 = arith.constant 0 : index
    %c0_32 = arith.constant 0 : index
    %28 = vector.load %arg5[%c0_31, %c0_32] : memref<112x128xf32, #tpu.memory_space<vmem>>, vector<112x128xf32>
    tpu.vector_store %arg5[%c0_31, %c0_32], %27 {strides = array<i32>} : memref<112x128xf32, #tpu.memory_space<vmem>>, vector<112x128xf32>,
    %c0_33 = arith.constant 0 : index
    %c16 = arith.constant 16 : index
    %c0_34 = arith.constant 0 : index
    %29 = vector.load %arg1[%c0_33, %c16, %c0_34] : memref<1x152x4xf32, #tpu.memory_space<vmem>>, vector<1x112x4xf32>
    %30 = vector.shape_cast %29 : vector<1x112x4xf32> to vector<112x4xf32>
    %c0_35 = arith.constant 0 : index
    %c0_36 = arith.constant 0 : index
    %31 = vector.load %arg5[%c0_35, %c0_36] : memref<112x128xf32, #tpu.memory_space<vmem>>, vector<112x128xf32>
    %c3 = arith.constant 3 : index
    %c0_37 = arith.constant 0 : index
    %c0_38 = arith.constant 0 : index
    %32 = vector.load %arg2[%c3, %c0_37, %c0_38] : memref<9x4x128xf32, #tpu.memory_space<vmem>>, vector<1x4x128xf32>
    %33 = vector.shape_cast %32 : vector<1x4x128xf32> to vector<4x128xf32>
    %cst_39 = arith.constant dense<0.000000e+00> : vector<112x128xf32>
    %34 = tpu.matmul %30, %33, %cst_39 {dimension_numbers = #tpu.dot_dimension_numbers<[1], [0], [0], [1], [0, 0, 1, 1], [], []>} : vector<112x4xf32>, vector<4x128xf32>, vector<112x128xf32> -> vector<112x128xf32>
    %35 = arith.addf %31, %34 : vector<112x128xf32>
    %c0_40 = arith.constant 0 : index
    %c0_41 = arith.constant 0 : index
    %36 = vector.load %arg5[%c0_40, %c0_41] : memref<112x128xf32, #tpu.memory_space<vmem>>, vector<112x128xf32>
    tpu.vector_store %arg5[%c0_40, %c0_41], %35 {strides = array<i32>} : memref<112x128xf32, #tpu.memory_space<vmem>>, vector<112x128xf32>,
    %c0_42 = arith.constant 0 : index
    %c17 = arith.constant 17 : index
    %c0_43 = arith.constant 0 : index
    %37 = vector.load %arg1[%c0_42, %c17, %c0_43] : memref<1x152x4xf32, #tpu.memory_space<vmem>>, vector<1x112x4xf32>
    %38 = vector.shape_cast %37 : vector<1x112x4xf32> to vector<112x4xf32>
    %c0_44 = arith.constant 0 : index
    %c0_45 = arith.constant 0 : index
    %39 = vector.load %arg5[%c0_44, %c0_45] : memref<112x128xf32, #tpu.memory_space<vmem>>, vector<112x128xf32>
    %c4 = arith.constant 4 : index
    %c0_46 = arith.constant 0 : index
    %c0_47 = arith.constant 0 : index
    %40 = vector.load %arg2[%c4, %c0_46, %c0_47] : memref<9x4x128xf32, #tpu.memory_space<vmem>>, vector<1x4x128xf32>
    %41 = vector.shape_cast %40 : vector<1x4x128xf32> to vector<4x128xf32>
    %cst_48 = arith.constant dense<0.000000e+00> : vector<112x128xf32>
    %42 = tpu.matmul %38, %41, %cst_48 {dimension_numbers = #tpu.dot_dimension_numbers<[1], [0], [0], [1], [0, 0, 1, 1], [], []>} : vector<112x4xf32>, vector<4x128xf32>, vector<112x128xf32> -> vector<112x128xf32>
    %43 = arith.addf %39, %42 : vector<112x128xf32>
    %c0_49 = arith.constant 0 : index
    %c0_50 = arith.constant 0 : index
    %44 = vector.load %arg5[%c0_49, %c0_50] : memref<112x128xf32, #tpu.memory_space<vmem>>, vector<112x128xf32>
    tpu.vector_store %arg5[%c0_49, %c0_50], %43 {strides = array<i32>} : memref<112x128xf32, #tpu.memory_space<vmem>>, vector<112x128xf32>,
    %c0_51 = arith.constant 0 : index
    %c18 = arith.constant 18 : index
    %c0_52 = arith.constant 0 : index
    %45 = vector.load %arg1[%c0_51, %c18, %c0_52] : memref<1x152x4xf32, #tpu.memory_space<vmem>>, vector<1x112x4xf32>
    %46 = vector.shape_cast %45 : vector<1x112x4xf32> to vector<112x4xf32>
    %c0_53 = arith.constant 0 : index
    %c0_54 = arith.constant 0 : index
    %47 = vector.load %arg5[%c0_53, %c0_54] : memref<112x128xf32, #tpu.memory_space<vmem>>, vector<112x128xf32>
    %c5 = arith.constant 5 : index
    %c0_55 = arith.constant 0 : index
    %c0_56 = arith.constant 0 : index
    %48 = vector.load %arg2[%c5, %c0_55, %c0_56] : memref<9x4x128xf32, #tpu.memory_space<vmem>>, vector<1x4x128xf32>
    %49 = vector.shape_cast %48 : vector<1x4x128xf32> to vector<4x128xf32>
    %cst_57 = arith.constant dense<0.000000e+00> : vector<112x128xf32>
    %50 = tpu.matmul %46, %49, %cst_57 {dimension_numbers = #tpu.dot_dimension_numbers<[1], [0], [0], [1], [0, 0, 1, 1], [], []>} : vector<112x4xf32>, vector<4x128xf32>, vector<112x128xf32> -> vector<112x128xf32>
    %51 = arith.addf %47, %50 : vector<112x128xf32>
    %c0_58 = arith.constant 0 : index
    %c0_59 = arith.constant 0 : index
    %52 = vector.load %arg5[%c0_58, %c0_59] : memref<112x128xf32, #tpu.memory_space<vmem>>, vector<112x128xf32>
    tpu.vector_store %arg5[%c0_58, %c0_59], %51 {strides = array<i32>} : memref<112x128xf32, #tpu.memory_space<vmem>>, vector<112x128xf32>,
    %c0_60 = arith.constant 0 : index
    %c32 = arith.constant 32 : index
    %c0_61 = arith.constant 0 : index
    %53 = vector.load %arg1[%c0_60, %c32, %c0_61] : memref<1x152x4xf32, #tpu.memory_space<vmem>>, vector<1x112x4xf32>
    %54 = vector.shape_cast %53 : vector<1x112x4xf32> to vector<112x4xf32>
    %c0_62 = arith.constant 0 : index
    %c0_63 = arith.constant 0 : index
    %55 = vector.load %arg5[%c0_62, %c0_63] : memref<112x128xf32, #tpu.memory_space<vmem>>, vector<112x128xf32>
    %c6 = arith.constant 6 : index
    %c0_64 = arith.constant 0 : index
    %c0_65 = arith.constant 0 : index
    %56 = vector.load %arg2[%c6, %c0_64, %c0_65] : memref<9x4x128xf32, #tpu.memory_space<vmem>>, vector<1x4x128xf32>
    %57 = vector.shape_cast %56 : vector<1x4x128xf32> to vector<4x128xf32>
    %cst_66 = arith.constant dense<0.000000e+00> : vector<112x128xf32>
    %58 = tpu.matmul %54, %57, %cst_66 {dimension_numbers = #tpu.dot_dimension_numbers<[1], [0], [0], [1], [0, 0, 1, 1], [], []>} : vector<112x4xf32>, vector<4x128xf32>, vector<112x128xf32> -> vector<112x128xf32>
    %59 = arith.addf %55, %58 : vector<112x128xf32>
    %c0_67 = arith.constant 0 : index
    %c0_68 = arith.constant 0 : index
    %60 = vector.load %arg5[%c0_67, %c0_68] : memref<112x128xf32, #tpu.memory_space<vmem>>, vector<112x128xf32>
    tpu.vector_store %arg5[%c0_67, %c0_68], %59 {strides = array<i32>} : memref<112x128xf32, #tpu.memory_space<vmem>>, vector<112x128xf32>,
    %c0_69 = arith.constant 0 : index
    %c33 = arith.constant 33 : index
    %c0_70 = arith.constant 0 : index
    %61 = vector.load %arg1[%c0_69, %c33, %c0_70] : memref<1x152x4xf32, #tpu.memory_space<vmem>>, vector<1x112x4xf32>
    %62 = vector.shape_cast %61 : vector<1x112x4xf32> to vector<112x4xf32>
    %c0_71 = arith.constant 0 : index
    %c0_72 = arith.constant 0 : index
    %63 = vector.load %arg5[%c0_71, %c0_72] : memref<112x128xf32, #tpu.memory_space<vmem>>, vector<112x128xf32>
    %c7 = arith.constant 7 : index
    %c0_73 = arith.constant 0 : index
    %c0_74 = arith.constant 0 : index
    %64 = vector.load %arg2[%c7, %c0_73, %c0_74] : memref<9x4x128xf32, #tpu.memory_space<vmem>>, vector<1x4x128xf32>
    %65 = vector.shape_cast %64 : vector<1x4x128xf32> to vector<4x128xf32>
    %cst_75 = arith.constant dense<0.000000e+00> : vector<112x128xf32>
    %66 = tpu.matmul %62, %65, %cst_75 {dimension_numbers = #tpu.dot_dimension_numbers<[1], [0], [0], [1], [0, 0, 1, 1], [], []>} : vector<112x4xf32>, vector<4x128xf32>, vector<112x128xf32> -> vector<112x128xf32>
    %67 = arith.addf %63, %66 : vector<112x128xf32>
    %c0_76 = arith.constant 0 : index
    %c0_77 = arith.constant 0 : index
    %68 = vector.load %arg5[%c0_76, %c0_77] : memref<112x128xf32, #tpu.memory_space<vmem>>, vector<112x128xf32>
    tpu.vector_store %arg5[%c0_76, %c0_77], %67 {strides = array<i32>} : memref<112x128xf32, #tpu.memory_space<vmem>>, vector<112x128xf32>,
    %c0_78 = arith.constant 0 : index
    %c34 = arith.constant 34 : index
    %c0_79 = arith.constant 0 : index
    %69 = vector.load %arg1[%c0_78, %c34, %c0_79] : memref<1x152x4xf32, #tpu.memory_space<vmem>>, vector<1x112x4xf32>
    %70 = vector.shape_cast %69 : vector<1x112x4xf32> to vector<112x4xf32>
    %c0_80 = arith.constant 0 : index
    %c0_81 = arith.constant 0 : index
    %71 = vector.load %arg5[%c0_80, %c0_81] : memref<112x128xf32, #tpu.memory_space<vmem>>, vector<112x128xf32>
    %c8 = arith.constant 8 : index
    %c0_82 = arith.constant 0 : index
    %c0_83 = arith.constant 0 : index
    %72 = vector.load %arg2[%c8, %c0_82, %c0_83] : memref<9x4x128xf32, #tpu.memory_space<vmem>>, vector<1x4x128xf32>
    %73 = vector.shape_cast %72 : vector<1x4x128xf32> to vector<4x128xf32>
    %cst_84 = arith.constant dense<0.000000e+00> : vector<112x128xf32>
    %74 = tpu.matmul %70, %73, %cst_84 {dimension_numbers = #tpu.dot_dimension_numbers<[1], [0], [0], [1], [0, 0, 1, 1], [], []>} : vector<112x4xf32>, vector<4x128xf32>, vector<112x128xf32> -> vector<112x128xf32>
    %75 = arith.addf %71, %74 : vector<112x128xf32>
    %c0_85 = arith.constant 0 : index
    %c0_86 = arith.constant 0 : index
    %76 = vector.load %arg5[%c0_85, %c0_86] : memref<112x128xf32, #tpu.memory_space<vmem>>, vector<112x128xf32>
    tpu.vector_store %arg5[%c0_85, %c0_86], %75 {strides = array<i32>} : memref<112x128xf32, #tpu.memory_space<vmem>>, vector<112x128xf32>,
    %c0_87 = arith.constant 0 : index
    %c0_88 = arith.constant 0 : index
    %77 = vector.load %arg5[%c0_87, %c0_88] : memref<112x128xf32, #tpu.memory_space<vmem>>, vector<112x128xf32>
    %78 = tpu.iota {dimensions = array<i32: 0>} : vector<112x128xi32>
    %c16_i32 = arith.constant 16 : i32
    %c0_i32_89 = arith.constant 0 : i32
    %79 = arith.cmpi eq, %c16_i32, %c0_i32_89 : i32
    %c1_i32 = arith.constant 1 : i32
    %80 = arith.select %79, %c1_i32, %c16_i32 : i32
    %81 = vector.broadcast %80 : i32 to vector<112x128xi32>
    %82 = arith.remsi %78, %81 : vector<112x128xi32>
    %c0_i32_90 = arith.constant 0 : i32
    %83 = vector.broadcast %c0_i32_90 : i32 to vector<112x128xi32>
    %84 = arith.cmpi ne, %82, %83 : vector<112x128xi32>
    %c0_i32_91 = arith.constant 0 : i32
    %85 = vector.broadcast %c0_i32_91 : i32 to vector<112x128xi32>
    %86 = arith.cmpi slt, %82, %85 : vector<112x128xi32>
    %c0_i32_92 = arith.constant 0 : i32
    %87 = arith.cmpi slt, %80, %c0_i32_92 : i32
    %88 = vector.broadcast %87 : i1 to vector<112x128xi1>
    %89 = vector.broadcast %88 : vector<112x128xi1> to vector<112x128xi1>
    %90 = arith.xori %86, %89 : vector<112x128xi1>
    %91 = arith.andi %90, %84 : vector<112x128xi1>
    %92 = vector.broadcast %80 : i32 to vector<112x128xi32>
    %93 = arith.addi %82, %92 : vector<112x128xi32>
    %94 = arith.select %91, %93, %82 : vector<112x128xi1>, vector<112x128xi32>
    %c14_i32 = arith.constant 14 : i32
    %95 = vector.broadcast %c14_i32 : i32 to vector<112x128xi32>
    %96 = arith.cmpi slt, %94, %95 : vector<112x128xi32>
    %cst_93 = arith.constant 0.000000e+00 : f32
    %97 = vector.broadcast %cst_93 : f32 to vector<112x128xf32>
    %98 = arith.select %96, %77, %97 : vector<112x128xi1>, vector<112x128xf32>
    %c0_94 = arith.constant 0 : index
    %c0_95 = arith.constant 0 : index
    %99 = vector.load %arg3[%c0_94, %c0_95] : memref<1x128xf32, #tpu.memory_space<vmem>>, vector<1x128xf32>
    %cst_96 = arith.constant dense<0.000000e+00> : vector<128xf32>
    %100 = vector.multi_reduction <add>, %98, %cst_96 [0] : vector<112x128xf32> to vector<128xf32>
    %101 = vector.shape_cast %100 : vector<128xf32> to vector<1x128xf32>
    %102 = arith.addf %99, %101 : vector<1x128xf32>
    %c0_97 = arith.constant 0 : index
    %c0_98 = arith.constant 0 : index
    %103 = vector.load %arg3[%c0_97, %c0_98] : memref<1x128xf32, #tpu.memory_space<vmem>>, vector<1x128xf32>
    tpu.vector_store %arg3[%c0_97, %c0_98], %102 {strides = array<i32>} : memref<1x128xf32, #tpu.memory_space<vmem>>, vector<1x128xf32>,
    %c0_99 = arith.constant 0 : index
    %c0_100 = arith.constant 0 : index
    %104 = vector.load %arg4[%c0_99, %c0_100] : memref<1x128xf32, #tpu.memory_space<vmem>>, vector<1x128xf32>
    %105 = arith.mulf %98, %98 : vector<112x128xf32>
    %cst_101 = arith.constant dense<0.000000e+00> : vector<128xf32>
    %106 = vector.multi_reduction <add>, %105, %cst_101 [0] : vector<112x128xf32> to vector<128xf32>
    %107 = vector.shape_cast %106 : vector<128xf32> to vector<1x128xf32>
    %108 = arith.addf %104, %107 : vector<1x128xf32>
    %c0_102 = arith.constant 0 : index
    %c0_103 = arith.constant 0 : index
    %109 = vector.load %arg4[%c0_102, %c0_103] : memref<1x128xf32, #tpu.memory_space<vmem>>, vector<1x128xf32>
    tpu.vector_store %arg4[%c0_102, %c0_103], %108 {strides = array<i32>} : memref<1x128xf32, #tpu.memory_space<vmem>>, vector<1x128xf32>,
    return
  }
  func.func @transform_0(%arg0: i32) -> (i32, i32, i32) {
    %c0_i32 = arith.constant 0 : i32
    %c0_i32_0 = arith.constant 0 : i32
    %c0_i32_1 = arith.constant 0 : i32
    return %arg0, %c0_i32, %c0_i32_0 : i32, i32, i32
  }
  func.func @transform_1(%arg0: i32) -> (i32, i32, i32) {
    %c0_i32 = arith.constant 0 : i32
    %c0_i32_0 = arith.constant 0 : i32
    %c0_i32_1 = arith.constant 0 : i32
    %c0_i32_2 = arith.constant 0 : i32
    return %c0_i32, %c0_i32_0, %c0_i32_1 : i32, i32, i32
  }
  func.func @transform_2(%arg0: i32) -> (i32, i32) {
    %c0_i32 = arith.constant 0 : i32
    %c0_i32_0 = arith.constant 0 : i32
    %c0_i32_1 = arith.constant 0 : i32
    return %c0_i32, %c0_i32_0 : i32, i32
  }
  func.func @transform_3(%arg0: i32) -> (i32, i32) {
    %c0_i32 = arith.constant 0 : i32
    %c0_i32_0 = arith.constant 0 : i32
    %c0_i32_1 = arith.constant 0 : i32
    return %c0_i32, %c0_i32_0 : i32, i32
  }
}

</mosaic_0001>

<llo_original>
// kernel: tpu_custom_call.1
$region0: #{tpu_custom_call.1}
  #allocation0 [shape = 'u32[]', space=smem, size = 0x4, offset = 0x4, fixed_abs, tag = 'smem constant byte address 0x4 - core index']
  #allocation1 [shape = 'u32[144,128]{1,0:T(1,128)}', space=vmem, size = 0x12000, scoped, tag = 'internal scratch']
  #allocation2 [shape = 'f32[112,128]{1,0:T(8,128)}', space=vmem, size = 0xe000, scoped, tag = 'scratch operand']
  %s0 = inlined_call_operand.vmem [shape: f32[4,152,4], index: 0, kind: input, shape index: {}]
  %s1 = inlined_call_operand.vmem [shape: f32[9,4,128], index: 1, kind: input, shape index: {}]
  %s2 = inlined_call_operand.hbm [shape: f32[1,128], index: 2, kind: output, shape index: {0}]
  %s3 = inlined_call_operand.hbm [shape: f32[1,128], index: 3, kind: output, shape index: {1}]
  %4 = xla_tuple %s2, %s3
  %s5 = sld [smem:[#allocation0]]
  $region53: #{tpu_custom_call.1} parent=0
    _
  %s7 = ssub.s32 1, %s5
  %s8 = scalar_select 0, %s7, %s5
  $region1: #{tpu_custom_call.1} parent=0
    #allocation3 [shape = 'u8[512]{0}', space=vmem, size = 0x400, scoped, tag = 'output window, operand 0, single buffered']
    #allocation4 [shape = 's32[2]{0}', space=sflag, size = 0x8, scoped, tag = 'scoped memory for tpu_custom_call.1']
    #allocation5 [shape = 'u8[512]{0}', space=vmem, size = 0x400, scoped, tag = 'output window, operand 1, single buffered']
    #allocation6 [shape = 's32[1]{0}', space=sflag, size = 0x4, scoped, tag = 'scoped memory for tpu_custom_call.1']
    %9 = vsyncpa [#allocation4], 0
    %10 = vsyncpa [#allocation6], 0
    loop: start=0, step=1, limit=6
    $region2: #{tpu_custom_call.1} parent=1 // loop_pre_header
      _
    $region3: #{tpu_custom_call.1} parent=1 // loop_header
      %s12 = sphi 0, %s16
      %p13 = scmp.ge.s32.totalorder %s12, 6
      %s22 = sphi 0, %s24
      %s25 = sphi 0, %s22
      %s26 = sphi 0, %s25
      %s42 = sphi 0, %s26
      %s46 = sphi 0, %s46
      %s48 = sphi 0, %s46
      %s49 = sphi 0, %s48
      %s63 = sphi 0, %s49
      %s67 = sphi 0, %s67
      %s69 = sphi 0, %s67
      %s70 = sphi 0, %s69
      %s84 = sphi 0, %s70
      %s88 = sphi 0, %s88
      %s90 = sphi 0, %s88
      %s91 = sphi 0, %s90
      %s105 = sphi 0, %s91
    $region4: #{tpu_custom_call.1} parent=1 // loop_header_branch
      %15 = sbr.rel (%p13) target = $region8
    $region5: #{tpu_custom_call.1} parent=1 // loop_body
      %s17 = ssub.s32 %s12, 1
      %s18 = ssub.s32 %s12, 2
      %s19 = sadd.s32 %s12, 1
      %s20 = ssub.s32 %s12, %s19
      %p21 = scmp.eq.s32.totalorder %s20, 0
      %s23 = sadd.s32 %s22, 1
      %s24 = scalar_select %p21, %s22, %s23
      %p27 = pneg %p21
      %p28 = scmp.eq.s32.totalorder %s12, 3
      %p29 = por %p27, %p28
      %p30 = scmp.ne.s32.totalorder %s22, %s25
      %p31 = scmp.eq.s32.totalorder %s12, 0
      %p32 = por %p30, %p31
      %p33 = scmp.ne.s32.totalorder %s22, %s25
      %p34 = scmp.eq.s32.totalorder %s17, 3
      %p35 = por %p33, %p34
      %p36 = scmp.ne.s32.totalorder %s25, %s26
      %p37 = scmp.eq.s32.totalorder %s17, 0
      %p38 = por %p36, %p37
      %p39 = scmp.ne.s32.totalorder %s25, %s26
      %p40 = scmp.eq.s32.totalorder %s18, 3
      %p41 = por %p39, %p40
      %p43 = scmp.ne.s32.totalorder %s26, %s42
      %p44 = scmp.eq.s32.totalorder %s18, 0
      %p45 = por %p43, %p44
      %s47 = sadd.s32 %s46, 1
      %p50 = scmp.eq.s32.totalorder %s12, 3
      %p51 = scmp.ne.s32.totalorder %s46, %s48
      %p52 = scmp.eq.s32.totalorder %s12, 0
      %p53 = por %p51, %p52
      %p54 = scmp.ne.s32.totalorder %s46, %s48
      %p55 = scmp.eq.s32.totalorder %s17, 3
      %p56 = por %p54, %p55
      %p57 = scmp.ne.s32.totalorder %s48, %s49
      %p58 = scmp.eq.s32.totalorder %s17, 0
      %p59 = por %p57, %p58
      %p60 = scmp.ne.s32.totalorder %s48, %s49
      %p61 = scmp.eq.s32.totalorder %s18, 3
      %p62 = por %p60, %p61
      %p64 = scmp.ne.s32.totalorder %s49, %s63
      %p65 = scmp.eq.s32.totalorder %s18, 0
      %p66 = por %p64, %p65
      %s68 = sadd.s32 %s67, 1
      %p71 = scmp.eq.s32.totalorder %s12, 3
      %p72 = scmp.ne.s32.totalorder %s67, %s69
      %p73 = scmp.eq.s32.totalorder %s12, 0
      %p74 = por %p72, %p73
      %p75 = scmp.ne.s32.totalorder %s67, %s69
      %p76 = scmp.eq.s32.totalorder %s17, 3
      %p77 = por %p75, %p76
      %p78 = scmp.ne.s32.totalorder %s69, %s70
      %p79 = scmp.eq.s32.totalorder %s17, 0
      %p80 = por %p78, %p79
      %p81 = scmp.ne.s32.totalorder %s69, %s70
      %p82 = scmp.eq.s32.totalorder %s18, 3
      %p83 = por %p81, %p82
      %p85 = scmp.ne.s32.totalorder %s70, %s84
      %p86 = scmp.eq.s32.totalorder %s18, 0
      %p87 = por %p85, %p86
      %s89 = sadd.s32 %s88, 1
      %p92 = scmp.eq.s32.totalorder %s12, 3
      %p93 = scmp.ne.s32.totalorder %s88, %s90
      %p94 = scmp.eq.s32.totalorder %s12, 0
      %p95 = por %p93, %p94
      %p96 = scmp.ne.s32.totalorder %s88, %s90
      %p97 = scmp.eq.s32.totalorder %s17, 3
      %p98 = por %p96, %p97
      %p99 = scmp.ne.s32.totalorder %s90, %s91
      %p100 = scmp.eq.s32.totalorder %s17, 0
      %p101 = por %p99, %p100
      %p102 = scmp.ne.s32.totalorder %s90, %s91
      %p103 = scmp.eq.s32.totalorder %s18, 3
      %p104 = por %p102, %p103
      %p106 = scmp.ne.s32.totalorder %s91, %s105
      %p107 = scmp.eq.s32.totalorder %s18, 0
      %p108 = por %p106, %p107
      %p109 = scmp.le.s32.totalorder 1, %s12
      %p110 = scmp.lt.s32.totalorder %s12, 5
      %p111 = pnand %p109, %p110
      %p112 = pneg %p111
      // Predicated region
      $region9: #{tpu_custom_call.1} parent=5 // pred_check
        _
      $region10: #{tpu_custom_call.1} parent=5 // pred_check_branch
        %114 = sbr.rel (%p111) target = $region12
      $region11: #{tpu_custom_call.1} parent=5 // pred_region
        %s115 = ssub.s32 %s12, 1
        // Predicated region
        $region13: #{tpu_custom_call.1} parent=11 // pred_check
          %p116 = pneg %p59
        $region14: #{tpu_custom_call.1} parent=11 // pred_check_branch
          %118 = sbr.rel (%p116) target = $region16
        $region15: #{tpu_custom_call.1} parent=11 // pred_region
          _
        $region16: #{tpu_custom_call.1} parent=11 // pred_fallthru
          _
      $region12: #{tpu_custom_call.1} parent=5 // pred_fallthru
        _
      %p119 = scmp.lt.s32.totalorder %s12, 4
      // Predicated region
      $region17: #{tpu_custom_call.1} parent=5 // pred_check
        %p120 = pneg %p119
      $region18: #{tpu_custom_call.1} parent=5 // pred_check_branch
        %122 = sbr.rel (%p120) target = $region20
      $region19: #{tpu_custom_call.1} parent=5 // pred_region
        // Predicated region
        $region21: #{tpu_custom_call.1} parent=19 // pred_check
          %p123 = pneg %p32
        $region22: #{tpu_custom_call.1} parent=19 // pred_check_branch
          %125 = sbr.rel (%p123) target = $region24
        $region23: #{tpu_custom_call.1} parent=19 // pred_region
          %p126 = scmp.lt.s32.totalorder %s12, 3
          %s127 = scalar_select %p126, %s12, 3
          %s128 = smul.addr %s127, 19
          %s129 = smul.addr %s128, 8
          %s130 = scalar_lea.vmem %s0, %s129
        $region24: #{tpu_custom_call.1} parent=19 // pred_fallthru
          _
      $region20: #{tpu_custom_call.1} parent=5 // pred_fallthru
        _
      %p131 = scmp.le.s32.totalorder 1, %s12
      %p132 = scmp.lt.s32.totalorder %s12, 5
      %p133 = pnand %p131, %p132
      %p134 = pneg %p133
      // Predicated region
      $region25: #{tpu_custom_call.1} parent=5 // pred_check
        _
      $region26: #{tpu_custom_call.1} parent=5 // pred_check_branch
        %136 = sbr.rel (%p133) target = $region28
      $region27: #{tpu_custom_call.1} parent=5 // pred_region
        %s137 = ssub.s32 %s12, 1
        %p138 = scmp.lt.s32.totalorder %s17, 3
        %s139 = scalar_select %p138, %s17, 3
        %s140 = smul.addr %s139, 19
        %s141 = smul.addr %s140, 8
        %s142 = scalar_lea.vmem %s0, %s141
        %p143 = pneg %p38
        %p144 = pneg %p35
        %p145 = pneg %p59
        %p146 = pneg %p56
        %p147 = pneg %p80
        %p148 = pneg %p77
        %p149 = pneg %p101
        %p150 = pneg %p98
        %p151 = scmp.lt.s32.totalorder %s17, 3
        %s152 = scalar_select %p151, %s17, 3
        %s153 = smul.addr %s152, 19
        %s154 = smul.addr %s153, 8
        %s155 = scalar_lea.vmem %s0, %s154
        %p156 = scmp.eq.s32.totalorder %s17, 0
        // Predicated region
        $region29: #{tpu_custom_call.1} parent=27 // pred_check
          %p157 = pneg %p156
        $region30: #{tpu_custom_call.1} parent=27 // pred_check_branch
          %159 = sbr.rel (%p157) target = $region32
        $region31: #{tpu_custom_call.1} parent=27 // pred_region
          %160 = vst [vmem:[#allocation3] sm:$0x1] 0.0
          %161 = vst [vmem:[#allocation5] sm:$0x1] 0.0
        $region32: #{tpu_custom_call.1} parent=27 // pred_fallthru
          _
        %162 = vst [vmem:[#allocation2] sm:$0xff] 0.0
        %163 = vst [vmem:[#allocation2 + $0x8] sm:$0xff] 0.0
        %164 = vst [vmem:[#allocation2 + $0x10] sm:$0xff] 0.0
        %165 = vst [vmem:[#allocation2 + $0x18] sm:$0xff] 0.0
        %166 = vst [vmem:[#allocation2 + $0x20] sm:$0xff] 0.0
        %167 = vst [vmem:[#allocation2 + $0x28] sm:$0xff] 0.0
        %168 = vst [vmem:[#allocation2 + $0x30] sm:$0xff] 0.0
        %169 = vst [vmem:[#allocation2 + $0x38] sm:$0xff] 0.0
        %170 = vst [vmem:[#allocation2 + $0x40] sm:$0xff] 0.0
        %171 = vst [vmem:[#allocation2 + $0x48] sm:$0xff] 0.0
        %172 = vst [vmem:[#allocation2 + $0x50] sm:$0xff] 0.0
        %173 = vst [vmem:[#allocation2 + $0x58] sm:$0xff] 0.0
        %174 = vst [vmem:[#allocation2 + $0x60] sm:$0xff] 0.0
        %175 = vst [vmem:[#allocation2 + $0x68] sm:$0xff] 0.0
        %v176 = vld [vmem:[%s155] sm:$0xff]
        %v177 = vld [vmem:[%s155 + $0x8] sm:$0xff]
        %v178 = vld [vmem:[%s155 + $0x10] sm:$0xff]
        %v179 = vld [vmem:[%s155 + $0x18] sm:$0xff]
        %v180 = vld [vmem:[%s155 + $0x20] sm:$0xff]
        %v181 = vld [vmem:[%s155 + $0x28] sm:$0xff]
        %v182 = vld [vmem:[%s155 + $0x30] sm:$0xff]
        %v183 = vld [vmem:[%s155 + $0x38] sm:$0xff]
        %v184 = vld [vmem:[%s155 + $0x40] sm:$0xff]
        %v185 = vld [vmem:[%s155 + $0x48] sm:$0xff]
        %v186 = vld [vmem:[%s155 + $0x50] sm:$0xff]
        %v187 = vld [vmem:[%s155 + $0x58] sm:$0xff]
        %v188 = vld [vmem:[%s155 + $0x60] sm:$0xff]
        %v189 = vld [vmem:[%s155 + $0x68] sm:$0xff]
        %v190 = vld [vmem:[#allocation2] sm:$0xff]
        %v191 = vld [vmem:[#allocation2 + $0x8] sm:$0xff]
        %v192 = vld [vmem:[#allocation2 + $0x10] sm:$0xff]
        %v193 = vld [vmem:[#allocation2 + $0x18] sm:$0xff]
        %v194 = vld [vmem:[#allocation2 + $0x20] sm:$0xff]
        %v195 = vld [vmem:[#allocation2 + $0x28] sm:$0xff]
        %v196 = vld [vmem:[#allocation2 + $0x30] sm:$0xff]
        %v197 = vld [vmem:[#allocation2 + $0x38] sm:$0xff]
        %v198 = vld [vmem:[#allocation2 + $0x40] sm:$0xff]
        %v199 = vld [vmem:[#allocation2 + $0x48] sm:$0xff]
        %v200 = vld [vmem:[#allocation2 + $0x50] sm:$0xff]
        %v201 = vld [vmem:[#allocation2 + $0x58] sm:$0xff]
        %v202 = vld [vmem:[#allocation2 + $0x60] sm:$0xff]
        %v203 = vld [vmem:[#allocation2 + $0x68] sm:$0xff]
        %v204 = vld [vmem:[%s1] sm:$0xf]
        %vm205 = vcmask 31744
        %v207 = vsel %vm205, %v176, 0
        %v210 = vsel %vm205, %v177, 0
        %v213 = vsel %vm205, %v178, 0
        %v216 = vsel %vm205, %v179, 0
        %v219 = vsel %vm205, %v180, 0
        %v222 = vsel %vm205, %v181, 0
        %v225 = vsel %vm205, %v182, 0
        %v228 = vsel %vm205, %v183, 0
        %v231 = vsel %vm205, %v184, 0
        %v234 = vsel %vm205, %v185, 0
        %v237 = vsel %vm205, %v186, 0
        %v240 = vsel %vm205, %v187, 0
        %v243 = vsel %vm205, %v188, 0
        %v246 = vsel %vm205, %v189, 0
        %vm248 = vcmask 1043456
        %v250 = vsel %vm248, %v204, 0
        %252 = vmatprep.subr.mxu0 0.0
        %253 = vmatpush1.msra.mxu0 0.0
        %254 = vmatprep.subr.mxu0 0.0
        %255 = vmatpush1.msra.mxu0 0.0
        %256 = vmatprep.subr.mxu0 0.0
        %257 = vmatpush1.msra.mxu0 0.0
        %258 = vmatprep.subr.mxu0 0.0
        %259 = vmatpush1.msra.mxu0 0.0
        %260 = vmatprep.subr.mxu0 0.0
        %261 = vmatpush1.msra.mxu0 0.0
        %262 = vmatprep.subr.mxu0 0.0
        %263 = vmatpush1.msra.mxu0 0.0
        %264 = vmatprep.subr.mxu0 0.0
        %265 = vmatpush1.msra.mxu0 0.0
        %266 = vmatprep.subr.mxu0 0.0
        %267 = vmatpush1.msra.mxu0 0.0
        %268 = vmatprep.subr.mxu0 0.0
        %269 = vmatpush1.msra.mxu0 0.0
        %270 = vmatprep.subr.mxu0 0.0
        %271 = vmatpush1.msra.mxu0 0.0
        %272 = vmatprep.subr.mxu0 0.0
        %273 = vmatpush1.msra.mxu0 0.0
        %274 = vmatprep.subr.mxu0 0.0
        %275 = vmatpush1.msra.mxu0 0.0
        %276 = vmatprep.subr.mxu0 0.0
        %277 = vmatpush1.msra.mxu0 0.0
        %278 = vmatprep.subr.mxu0 0.0
        %279 = vmatpush1.msra.mxu0 0.0
        %280 = vmatprep.subr.mxu0 0.0
        %281 = vmatpush1.msra.mxu0 0.0
        %282 = vmatprep.subr.mxu0 0.0
        %283 = vmatpush1.msra.mxu0 %v250
        %284 = vmatprep.subr.mxu0 0.0
        %285 = vmatpush2.msra.mxu0 0.0
        %286 = vmatprep.subr.mxu0 0.0
        %287 = vmatpush2.msra.mxu0 0.0
        %288 = vmatprep.subr.mxu0 0.0
        %289 = vmatpush2.msra.mxu0 0.0
        %290 = vmatprep.subr.mxu0 0.0
        %291 = vmatpush2.msra.mxu0 0.0
        %292 = vmatprep.subr.mxu0 0.0
        %293 = vmatpush2.msra.mxu0 0.0
        %294 = vmatprep.subr.mxu0 0.0
        %295 = vmatpush2.msra.mxu0 0.0
        %296 = vmatprep.subr.mxu0 0.0
        %297 = vmatpush2.msra.mxu0 0.0
        %298 = vmatprep.subr.mxu0 0.0
        %299 = vmatpush2.msra.mxu0 0.0
        %300 = vmatprep.subr.mxu0 0.0
        %301 = vmatpush2.msra.mxu0 0.0
        %302 = vmatprep.subr.mxu0 0.0
        %303 = vmatpush2.msra.mxu0 0.0
        %304 = vmatprep.subr.mxu0 0.0
        %305 = vmatpush2.msra.mxu0 0.0
        %306 = vmatprep.subr.mxu0 0.0
        %307 = vmatpush2.msra.mxu0 0.0
        %308 = vmatprep.subr.mxu0 0.0
        %309 = vmatpush2.msra.mxu0 0.0
        %310 = vmatprep.subr.mxu0 0.0
        %311 = vmatpush2.msra.mxu0 0.0
        %312 = vmatprep.subr.mxu0 0.0
        %313 = vmatpush2.msra.mxu0 0.0
        %314 = vmatprep.subr.mxu0 0.0
        %315 = vmatpush2.msra.mxu0 0.0
        %316 = vmatprep.mubr.f32.mxu0 0.0
        %317 = vmatmul.mubr.f32.gmra.mxu0 %v207
        %v318 = vpop.f32.mrf.mxu0
        %v319 = vadd.f32 0.0, %v318
        %v320 = vpop.f32.mrf.mxu0
        %321 = vmatprep.mubr.f32.mxu0 0.0
        %322 = vmatmul.mubr.f32.gmra.mxu0 %v210
        %v323 = vpop.f32.mrf.mxu0
        %v324 = vadd.f32 0.0, %v323
        %v325 = vpop.f32.mrf.mxu0
        %326 = vmatprep.mubr.f32.mxu0 0.0
        %327 = vmatmul.mubr.f32.gmra.mxu0 %v213
        %v328 = vpop.f32.mrf.mxu0
        %v329 = vadd.f32 0.0, %v328
        %v330 = vpop.f32.mrf.mxu0
        %331 = vmatprep.mubr.f32.mxu0 0.0
        %332 = vmatmul.mubr.f32.gmra.mxu0 %v216
        %v333 = vpop.f32.mrf.mxu0
        %v334 = vadd.f32 0.0, %v333
        %v335 = vpop.f32.mrf.mxu0
        %336 = vmatprep.mubr.f32.mxu0 0.0
        %337 = vmatmul.mubr.f32.gmra.mxu0 %v219
        %v338 = vpop.f32.mrf.mxu0
        %v339 = vadd.f32 0.0, %v338
        %v340 = vpop.f32.mrf.mxu0
        %341 = vmatprep.mubr.f32.mxu0 0.0
        %342 = vmatmul.mubr.f32.gmra.mxu0 %v222
        %v343 = vpop.f32.mrf.mxu0
        %v344 = vadd.f32 0.0, %v343
        %v345 = vpop.f32.mrf.mxu0
        %346 = vmatprep.mubr.f32.mxu0 0.0
        %347 = vmatmul.mubr.f32.gmra.mxu0 %v225
        %v348 = vpop.f32.mrf.mxu0
        %v349 = vadd.f32 0.0, %v348
        %v350 = vpop.f32.mrf.mxu0
        %351 = vmatprep.mubr.f32.mxu0 0.0
        %352 = vmatmul.mubr.f32.gmra.mxu0 %v228
        %v353 = vpop.f32.mrf.mxu0
        %v354 = vadd.f32 0.0, %v353
        %v355 = vpop.f32.mrf.mxu0
        %356 = vmatprep.mubr.f32.mxu0 0.0
        %357 = vmatmul.mubr.f32.gmra.mxu0 %v231
        %v358 = vpop.f32.mrf.mxu0
        %v359 = vadd.f32 0.0, %v358
        %v360 = vpop.f32.mrf.mxu0
        %361 = vmatprep.mubr.f32.mxu0 0.0
        %362 = vmatmul.mubr.f32.gmra.mxu0 %v234
        %v363 = vpop.f32.mrf.mxu0
        %v364 = vadd.f32 0.0, %v363
        %v365 = vpop.f32.mrf.mxu0
        %366 = vmatprep.mubr.f32.mxu0 0.0
        %367 = vmatmul.mubr.f32.gmra.mxu0 %v237
        %v368 = vpop.f32.mrf.mxu0
        %v369 = vadd.f32 0.0, %v368
        %v370 = vpop.f32.mrf.mxu0
        %371 = vmatprep.mubr.f32.mxu0 0.0
        %372 = vmatmul.mubr.f32.gmra.mxu0 %v240
        %v373 = vpop.f32.mrf.mxu0
        %v374 = vadd.f32 0.0, %v373
        %v375 = vpop.f32.mrf.mxu0
        %376 = vmatprep.mubr.f32.mxu0 0.0
        %377 = vmatmul.mubr.f32.gmra.mxu0 %v243
        %v378 = vpop.f32.mrf.mxu0
        %v379 = vadd.f32 0.0, %v378
        %v380 = vpop.f32.mrf.mxu0
        %381 = vmatprep.mubr.f32.mxu0 0.0
        %382 = vmatmul.mubr.f32.gmra.mxu0 %v246
        %v383 = vpop.f32.mrf.mxu0
        %v384 = vadd.f32 0.0, %v383
        %v385 = vpop.f32.mrf.mxu0
        %386 = vdwg.mxu0
        %v387 = vadd.f32 %v190, %v319
        %v388 = vadd.f32 %v191, %v324
        %v389 = vadd.f32 %v192, %v329
        %v390 = vadd.f32 %v193, %v334
        %v391 = vadd.f32 %v194, %v339
        %v392 = vadd.f32 %v195, %v344
        %v393 = vadd.f32 %v196, %v349
        %v394 = vadd.f32 %v197, %v354
        %v395 = vadd.f32 %v198, %v359
        %v396 = vadd.f32 %v199, %v364
        %v397 = vadd.f32 %v200, %v369
        %v398 = vadd.f32 %v201, %v374
        %v399 = vadd.f32 %v202, %v379
        %v400 = vadd.f32 %v203, %v384
        %401 = vst [vmem:[#allocation2] sm:$0xff] %v387
        %402 = vst [vmem:[#allocation2 + $0x8] sm:$0xff] %v388
        %403 = vst [vmem:[#allocation2 + $0x10] sm:$0xff] %v389
        %404 = vst [vmem:[#allocation2 + $0x18] sm:$0xff] %v390
        %405 = vst [vmem:[#allocation2 + $0x20] sm:$0xff] %v391
        %406 = vst [vmem:[#allocation2 + $0x28] sm:$0xff] %v392
        %407 = vst [vmem:[#allocation2 + $0x30] sm:$0xff] %v393
        %408 = vst [vmem:[#allocation2 + $0x38] sm:$0xff] %v394
        %409 = vst [vmem:[#allocation2 + $0x40] sm:$0xff] %v395
        %410 = vst [vmem:[#allocation2 + $0x48] sm:$0xff] %v396
        %411 = vst [vmem:[#allocation2 + $0x50] sm:$0xff] %v397
        %412 = vst [vmem:[#allocation2 + $0x58] sm:$0xff] %v398
        %413 = vst [vmem:[#allocation2 + $0x60] sm:$0xff] %v399
        %414 = vst [vmem:[#allocation2 + $0x68] sm:$0xff] %v400
        %v415 = vld [vmem:[%s155 + $0x1] sm:$0xff]
        %v416 = vld [vmem:[%s155 + $0x9] sm:$0xff]
        %v417 = vld [vmem:[%s155 + $0x11] sm:$0xff]
        %v418 = vld [vmem:[%s155 + $0x19] sm:$0xff]
        %v419 = vld [vmem:[%s155 + $0x21] sm:$0xff]
        %v420 = vld [vmem:[%s155 + $0x29] sm:$0xff]
        %v421 = vld [vmem:[%s155 + $0x31] sm:$0xff]
        %v422 = vld [vmem:[%s155 + $0x39] sm:$0xff]
        %v423 = vld [vmem:[%s155 + $0x41] sm:$0xff]
        %v424 = vld [vmem:[%s155 + $0x49] sm:$0xff]
        %v425 = vld [vmem:[%s155 + $0x51] sm:$0xff]
        %v426 = vld [vmem:[%s155 + $0x59] sm:$0xff]
        %v427 = vld [vmem:[%s155 + $0x61] sm:$0xff]
        %v428 = vld [vmem:[%s155 + $0x69] sm:$0xff]
        %v429 = vld [vmem:[#allocation2] sm:$0xff]
        %v430 = vld [vmem:[#allocation2 + $0x8] sm:$0xff]
        %v431 = vld [vmem:[#allocation2 + $0x10] sm:$0xff]
        %v432 = vld [vmem:[#allocation2 + $0x18] sm:$0xff]
        %v433 = vld [vmem:[#allocation2 + $0x20] sm:$0xff]
        %v434 = vld [vmem:[#allocation2 + $0x28] sm:$0xff]
        %v435 = vld [vmem:[#allocation2 + $0x30] sm:$0xff]
        %v436 = vld [vmem:[#allocation2 + $0x38] sm:$0xff]
        %v437 = vld [vmem:[#allocation2 + $0x40] sm:$0xff]
        %v438 = vld [vmem:[#allocation2 + $0x48] sm:$0xff]
        %v439 = vld [vmem:[#allocation2 + $0x50] sm:$0xff]
        %v440 = vld [vmem:[#allocation2 + $0x58] sm:$0xff]
        %v441 = vld [vmem:[#allocation2 + $0x60] sm:$0xff]
        %v442 = vld [vmem:[#allocation2 + $0x68] sm:$0xff]
        %s443 = scalar_lea.vmem %s1, 4
        %v444 = vld [vmem:[%s443] sm:$0xf]
        %v446 = vsel %vm205, %v415, 0
        %v449 = vsel %vm205, %v416, 0
        %v452 = vsel %vm205, %v417, 0
        %v455 = vsel %vm205, %v418, 0
        %v458 = vsel %vm205, %v419, 0
        %v461 = vsel %vm205, %v420, 0
        %v464 = vsel %vm205, %v421, 0
        %v467 = vsel %vm205, %v422, 0
        %v470 = vsel %vm205, %v423, 0
        %v473 = vsel %vm205, %v424, 0
        %v476 = vsel %vm205, %v425, 0
        %v479 = vsel %vm205, %v426, 0
        %v482 = vsel %vm205, %v427, 0
        %v485 = vsel %vm205, %v428, 0
        %v488 = vsel %vm248, %v444, 0
        %490 = vmatprep.subr.mxu0 0.0
        %491 = vmatpush1.msra.mxu0 0.0
        %492 = vmatprep.subr.mxu0 0.0
        %493 = vmatpush1.msra.mxu0 0.0
        %494 = vmatprep.subr.mxu0 0.0
        %495 = vmatpush1.msra.mxu0 0.0
        %496 = vmatprep.subr.mxu0 0.0
        %497 = vmatpush1.msra.mxu0 0.0
        %498 = vmatprep.subr.mxu0 0.0
        %499 = vmatpush1.msra.mxu0 0.0
        %500 = vmatprep.subr.mxu0 0.0
        %501 = vmatpush1.msra.mxu0 0.0
        %502 = vmatprep.subr.mxu0 0.0
        %503 = vmatpush1.msra.mxu0 0.0
        %504 = vmatprep.subr.mxu0 0.0
        %505 = vmatpush1.msra.mxu0 0.0
        %506 = vmatprep.subr.mxu0 0.0
        %507 = vmatpush1.msra.mxu0 0.0
        %508 = vmatprep.subr.mxu0 0.0
        %509 = vmatpush1.msra.mxu0 0.0
        %510 = vmatprep.subr.mxu0 0.0
        %511 = vmatpush1.msra.mxu0 0.0
        %512 = vmatprep.subr.mxu0 0.0
        %513 = vmatpush1.msra.mxu0 0.0
        %514 = vmatprep.subr.mxu0 0.0
        %515 = vmatpush1.msra.mxu0 0.0
        %516 = vmatprep.subr.mxu0 0.0
        %517 = vmatpush1.msra.mxu0 0.0
        %518 = vmatprep.subr.mxu0 0.0
        %519 = vmatpush1.msra.mxu0 0.0
        %520 = vmatprep.subr.mxu0 0.0
        %521 = vmatpush1.msra.mxu0 %v488
        %522 = vmatprep.subr.mxu0 0.0
        %523 = vmatpush2.msra.mxu0 0.0
        %524 = vmatprep.subr.mxu0 0.0
        %525 = vmatpush2.msra.mxu0 0.0
        %526 = vmatprep.subr.mxu0 0.0
        %527 = vmatpush2.msra.mxu0 0.0
        %528 = vmatprep.subr.mxu0 0.0
        %529 = vmatpush2.msra.mxu0 0.0
        %530 = vmatprep.subr.mxu0 0.0
        %531 = vmatpush2.msra.mxu0 0.0
        %532 = vmatprep.subr.mxu0 0.0
        %533 = vmatpush2.msra.mxu0 0.0
        %534 = vmatprep.subr.mxu0 0.0
        %535 = vmatpush2.msra.mxu0 0.0
        %536 = vmatprep.subr.mxu0 0.0
        %537 = vmatpush2.msra.mxu0 0.0
        %538 = vmatprep.subr.mxu0 0.0
        %539 = vmatpush2.msra.mxu0 0.0
        %540 = vmatprep.subr.mxu0 0.0
        %541 = vmatpush2.msra.mxu0 0.0
        %542 = vmatprep.subr.mxu0 0.0
        %543 = vmatpush2.msra.mxu0 0.0
        %544 = vmatprep.subr.mxu0 0.0
        %545 = vmatpush2.msra.mxu0 0.0
        %546 = vmatprep.subr.mxu0 0.0
        %547 = vmatpush2.msra.mxu0 0.0
        %548 = vmatprep.subr.mxu0 0.0
        %549 = vmatpush2.msra.mxu0 0.0
        %550 = vmatprep.subr.mxu0 0.0
        %551 = vmatpush2.msra.mxu0 0.0
        %552 = vmatprep.subr.mxu0 0.0
        %553 = vmatpush2.msra.mxu0 0.0
        %554 = vmatprep.mubr.f32.mxu0 0.0
        %555 = vmatmul.mubr.f32.gmra.mxu0 %v446
        %v556 = vpop.f32.mrf.mxu0
        %v557 = vadd.f32 0.0, %v556
        %v558 = vpop.f32.mrf.mxu0
        %559 = vmatprep.mubr.f32.mxu0 0.0
        %560 = vmatmul.mubr.f32.gmra.mxu0 %v449
        %v561 = vpop.f32.mrf.mxu0
        %v562 = vadd.f32 0.0, %v561
        %v563 = vpop.f32.mrf.mxu0
        %564 = vmatprep.mubr.f32.mxu0 0.0
        %565 = vmatmul.mubr.f32.gmra.mxu0 %v452
        %v566 = vpop.f32.mrf.mxu0
        %v567 = vadd.f32 0.0, %v566
        %v568 = vpop.f32.mrf.mxu0
        %569 = vmatprep.mubr.f32.mxu0 0.0
        %570 = vmatmul.mubr.f32.gmra.mxu0 %v455
        %v571 = vpop.f32.mrf.mxu0
        %v572 = vadd.f32 0.0, %v571
        %v573 = vpop.f32.mrf.mxu0
        %574 = vmatprep.mubr.f32.mxu0 0.0
        %575 = vmatmul.mubr.f32.gmra.mxu0 %v458
        %v576 = vpop.f32.mrf.mxu0
        %v577 = vadd.f32 0.0, %v576
        %v578 = vpop.f32.mrf.mxu0
        %579 = vmatprep.mubr.f32.mxu0 0.0
        %580 = vmatmul.mubr.f32.gmra.mxu0 %v461
        %v581 = vpop.f32.mrf.mxu0
        %v582 = vadd.f32 0.0, %v581
        %v583 = vpop.f32.mrf.mxu0
        %584 = vmatprep.mubr.f32.mxu0 0.0
        %585 = vmatmul.mubr.f32.gmra.mxu0 %v464
        %v586 = vpop.f32.mrf.mxu0
        %v587 = vadd.f32 0.0, %v586
        %v588 = vpop.f32.mrf.mxu0
        %589 = vmatprep.mubr.f32.mxu0 0.0
        %590 = vmatmul.mubr.f32.gmra.mxu0 %v467
        %v591 = vpop.f32.mrf.mxu0
        %v592 = vadd.f32 0.0, %v591
        %v593 = vpop.f32.mrf.mxu0
        %594 = vmatprep.mubr.f32.mxu0 0.0
        %595 = vmatmul.mubr.f32.gmra.mxu0 %v470
        %v596 = vpop.f32.mrf.mxu0
        %v597 = vadd.f32 0.0, %v596
        %v598 = vpop.f32.mrf.mxu0
        %599 = vmatprep.mubr.f32.mxu0 0.0
        %600 = vmatmul.mubr.f32.gmra.mxu0 %v473
        %v601 = vpop.f32.mrf.mxu0
        %v602 = vadd.f32 0.0, %v601
        %v603 = vpop.f32.mrf.mxu0
        %604 = vmatprep.mubr.f32.mxu0 0.0
        %605 = vmatmul.mubr.f32.gmra.mxu0 %v476
        %v606 = vpop.f32.mrf.mxu0
        %v607 = vadd.f32 0.0, %v606
        %v608 = vpop.f32.mrf.mxu0
        %609 = vmatprep.mubr.f32.mxu0 0.0
        %610 = vmatmul.mubr.f32.gmra.mxu0 %v479
        %v611 = vpop.f32.mrf.mxu0
        %v612 = vadd.f32 0.0, %v611
        %v613 = vpop.f32.mrf.mxu0
        %614 = vmatprep.mubr.f32.mxu0 0.0
        %615 = vmatmul.mubr.f32.gmra.mxu0 %v482
        %v616 = vpop.f32.mrf.mxu0
        %v617 = vadd.f32 0.0, %v616
        %v618 = vpop.f32.mrf.mxu0
        %619 = vmatprep.mubr.f32.mxu0 0.0
        %620 = vmatmul.mubr.f32.gmra.mxu0 %v485
        %v621 = vpop.f32.mrf.mxu0
        %v622 = vadd.f32 0.0, %v621
        %v623 = vpop.f32.mrf.mxu0
        %624 = vdwg.mxu0
        %v625 = vadd.f32 %v429, %v557
        %v626 = vadd.f32 %v430, %v562
        %v627 = vadd.f32 %v431, %v567
        %v628 = vadd.f32 %v432, %v572
        %v629 = vadd.f32 %v433, %v577
        %v630 = vadd.f32 %v434, %v582
        %v631 = vadd.f32 %v435, %v587
        %v632 = vadd.f32 %v436, %v592
        %v633 = vadd.f32 %v437, %v597
        %v634 = vadd.f32 %v438, %v602
        %v635 = vadd.f32 %v439, %v607
        %v636 = vadd.f32 %v440, %v612
        %v637 = vadd.f32 %v441, %v617
        %v638 = vadd.f32 %v442, %v622
        %639 = vst [vmem:[#allocation2] sm:$0xff] %v625
        %640 = vst [vmem:[#allocation2 + $0x8] sm:$0xff] %v626
        %641 = vst [vmem:[#allocation2 + $0x10] sm:$0xff] %v627
        %642 = vst [vmem:[#allocation2 + $0x18] sm:$0xff] %v628
        %643 = vst [vmem:[#allocation2 + $0x20] sm:$0xff] %v629
        %644 = vst [vmem:[#allocation2 + $0x28] sm:$0xff] %v630
        %645 = vst [vmem:[#allocation2 + $0x30] sm:$0xff] %v631
        %646 = vst [vmem:[#allocation2 + $0x38] sm:$0xff] %v632
        %647 = vst [vmem:[#allocation2 + $0x40] sm:$0xff] %v633
        %648 = vst [vmem:[#allocation2 + $0x48] sm:$0xff] %v634
        %649 = vst [vmem:[#allocation2 + $0x50] sm:$0xff] %v635
        %650 = vst [vmem:[#allocation2 + $0x58] sm:$0xff] %v636
        %651 = vst [vmem:[#allocation2 + $0x60] sm:$0xff] %v637
        %652 = vst [vmem:[#allocation2 + $0x68] sm:$0xff] %v638
        %v653 = vld [vmem:[%s155 + $0x2] sm:$0xff]
        %v654 = vld [vmem:[%s155 + $0xa] sm:$0xff]
        %v655 = vld [vmem:[%s155 + $0x12] sm:$0xff]
        %v656 = vld [vmem:[%s155 + $0x1a] sm:$0xff]
        %v657 = vld [vmem:[%s155 + $0x22] sm:$0xff]
        %v658 = vld [vmem:[%s155 + $0x2a] sm:$0xff]
        %v659 = vld [vmem:[%s155 + $0x32] sm:$0xff]
        %v660 = vld [vmem:[%s155 + $0x3a] sm:$0xff]
        %v661 = vld [vmem:[%s155 + $0x42] sm:$0xff]
        %v662 = vld [vmem:[%s155 + $0x4a] sm:$0xff]
        %v663 = vld [vmem:[%s155 + $0x52] sm:$0xff]
        %v664 = vld [vmem:[%s155 + $0x5a] sm:$0xff]
        %v665 = vld [vmem:[%s155 + $0x62] sm:$0xff]
        %v666 = vld [vmem:[%s155 + $0x6a] sm:$0xff]
        %v667 = vld [vmem:[#allocation2] sm:$0xff]
        %v668 = vld [vmem:[#allocation2 + $0x8] sm:$0xff]
        %v669 = vld [vmem:[#allocation2 + $0x10] sm:$0xff]
        %v670 = vld [vmem:[#allocation2 + $0x18] sm:$0xff]
        %v671 = vld [vmem:[#allocation2 + $0x20] sm:$0xff]
        %v672 = vld [vmem:[#allocation2 + $0x28] sm:$0xff]
        %v673 = vld [vmem:[#allocation2 + $0x30] sm:$0xff]
        %v674 = vld [vmem:[#allocation2 + $0x38] sm:$0xff]
        %v675 = vld [vmem:[#allocation2 + $0x40] sm:$0xff]
        %v676 = vld [vmem:[#allocation2 + $0x48] sm:$0xff]
        %v677 = vld [vmem:[#allocation2 + $0x50] sm:$0xff]
        %v678 = vld [vmem:[#allocation2 + $0x58] sm:$0xff]
        %v679 = vld [vmem:[#allocation2 + $0x60] sm:$0xff]
        %v680 = vld [vmem:[#allocation2 + $0x68] sm:$0xff]
        %s681 = scalar_lea.vmem %s1, 8
        %v682 = vld [vmem:[%s681] sm:$0xf]
        %v684 = vsel %vm205, %v653, 0
        %v687 = vsel %vm205, %v654, 0
        %v690 = vsel %vm205, %v655, 0
        %v693 = vsel %vm205, %v656, 0
        %v696 = vsel %vm205, %v657, 0
        %v699 = vsel %vm205, %v658, 0
        %v702 = vsel %vm205, %v659, 0
        %v705 = vsel %vm205, %v660, 0
        %v708 = vsel %vm205, %v661, 0
        %v711 = vsel %vm205, %v662, 0
        %v714 = vsel %vm205, %v663, 0
        %v717 = vsel %vm205, %v664, 0
        %v720 = vsel %vm205, %v665, 0
        %v723 = vsel %vm205, %v666, 0
        %v726 = vsel %vm248, %v682, 0
        %728 = vmatprep.subr.mxu0 0.0
        %729 = vmatpush1.msra.mxu0 0.0
        %730 = vmatprep.subr.mxu0 0.0
        %731 = vmatpush1.msra.mxu0 0.0
        %732 = vmatprep.subr.mxu0 0.0
        %733 = vmatpush1.msra.mxu0 0.0
        %734 = vmatprep.subr.mxu0 0.0
        %735 = vmatpush1.msra.mxu0 0.0
        %736 = vmatprep.subr.mxu0 0.0
        %737 = vmatpush1.msra.mxu0 0.0
        %738 = vmatprep.subr.mxu0 0.0
        %739 = vmatpush1.msra.mxu0 0.0
        %740 = vmatprep.subr.mxu0 0.0
        %741 = vmatpush1.msra.mxu0 0.0
        %742 = vmatprep.subr.mxu0 0.0
        %743 = vmatpush1.msra.mxu0 0.0
        %744 = vmatprep.subr.mxu0 0.0
        %745 = vmatpush1.msra.mxu0 0.0
        %746 = vmatprep.subr.mxu0 0.0
        %747 = vmatpush1.msra.mxu0 0.0
        %748 = vmatprep.subr.mxu0 0.0
        %749 = vmatpush1.msra.mxu0 0.0
        %750 = vmatprep.subr.mxu0 0.0
        %751 = vmatpush1.msra.mxu0 0.0
        %752 = vmatprep.subr.mxu0 0.0
        %753 = vmatpush1.msra.mxu0 0.0
        %754 = vmatprep.subr.mxu0 0.0
        %755 = vmatpush1.msra.mxu0 0.0
        %756 = vmatprep.subr.mxu0 0.0
        %757 = vmatpush1.msra.mxu0 0.0
        %758 = vmatprep.subr.mxu0 0.0
        %759 = vmatpush1.msra.mxu0 %v726
        %760 = vmatprep.subr.mxu0 0.0
        %761 = vmatpush2.msra.mxu0 0.0
        %762 = vmatprep.subr.mxu0 0.0
        %763 = vmatpush2.msra.mxu0 0.0
        %764 = vmatprep.subr.mxu0 0.0
        %765 = vmatpush2.msra.mxu0 0.0
        %766 = vmatprep.subr.mxu0 0.0
        %767 = vmatpush2.msra.mxu0 0.0
        %768 = vmatprep.subr.mxu0 0.0
        %769 = vmatpush2.msra.mxu0 0.0
        %770 = vmatprep.subr.mxu0 0.0
        %771 = vmatpush2.msra.mxu0 0.0
        %772 = vmatprep.subr.mxu0 0.0
        %773 = vmatpush2.msra.mxu0 0.0
        %774 = vmatprep.subr.mxu0 0.0
        %775 = vmatpush2.msra.mxu0 0.0
        %776 = vmatprep.subr.mxu0 0.0
        %777 = vmatpush2.msra.mxu0 0.0
        %778 = vmatprep.subr.mxu0 0.0
        %779 = vmatpush2.msra.mxu0 0.0
        %780 = vmatprep.subr.mxu0 0.0
        %781 = vmatpush2.msra.mxu0 0.0
        %782 = vmatprep.subr.mxu0 0.0
        %783 = vmatpush2.msra.mxu0 0.0
        %784 = vmatprep.subr.mxu0 0.0
        %785 = vmatpush2.msra.mxu0 0.0
        %786 = vmatprep.subr.mxu0 0.0
        %787 = vmatpush2.msra.mxu0 0.0
        %788 = vmatprep.subr.mxu0 0.0
        %789 = vmatpush2.msra.mxu0 0.0
        %790 = vmatprep.subr.mxu0 0.0
        %791 = vmatpush2.msra.mxu0 0.0
        %792 = vmatprep.mubr.f32.mxu0 0.0
        %793 = vmatmul.mubr.f32.gmra.mxu0 %v684
        %v794 = vpop.f32.mrf.mxu0
        %v795 = vadd.f32 0.0, %v794
        %v796 = vpop.f32.mrf.mxu0
        %797 = vmatprep.mubr.f32.mxu0 0.0
        %798 = vmatmul.mubr.f32.gmra.mxu0 %v687
        %v799 = vpop.f32.mrf.mxu0
        %v800 = vadd.f32 0.0, %v799
        %v801 = vpop.f32.mrf.mxu0
        %802 = vmatprep.mubr.f32.mxu0 0.0
        %803 = vmatmul.mubr.f32.gmra.mxu0 %v690
        %v804 = vpop.f32.mrf.mxu0
        %v805 = vadd.f32 0.0, %v804
        %v806 = vpop.f32.mrf.mxu0
        %807 = vmatprep.mubr.f32.mxu0 0.0
        %808 = vmatmul.mubr.f32.gmra.mxu0 %v693
        %v809 = vpop.f32.mrf.mxu0
        %v810 = vadd.f32 0.0, %v809
        %v811 = vpop.f32.mrf.mxu0
        %812 = vmatprep.mubr.f32.mxu0 0.0
        %813 = vmatmul.mubr.f32.gmra.mxu0 %v696
        %v814 = vpop.f32.mrf.mxu0
        %v815 = vadd.f32 0.0, %v814
        %v816 = vpop.f32.mrf.mxu0
        %817 = vmatprep.mubr.f32.mxu0 0.0
        %818 = vmatmul.mubr.f32.gmra.mxu0 %v699
        %v819 = vpop.f32.mrf.mxu0
        %v820 = vadd.f32 0.0, %v819
        %v821 = vpop.f32.mrf.mxu0
        %822 = vmatprep.mubr.f32.mxu0 0.0
        %823 = vmatmul.mubr.f32.gmra.mxu0 %v702
        %v824 = vpop.f32.mrf.mxu0
        %v825 = vadd.f32 0.0, %v824
        %v826 = vpop.f32.mrf.mxu0
        %827 = vmatprep.mubr.f32.mxu0 0.0
        %828 = vmatmul.mubr.f32.gmra.mxu0 %v705
        %v829 = vpop.f32.mrf.mxu0
        %v830 = vadd.f32 0.0, %v829
        %v831 = vpop.f32.mrf.mxu0
        %832 = vmatprep.mubr.f32.mxu0 0.0
        %833 = vmatmul.mubr.f32.gmra.mxu0 %v708
        %v834 = vpop.f32.mrf.mxu0
        %v835 = vadd.f32 0.0, %v834
        %v836 = vpop.f32.mrf.mxu0
        %837 = vmatprep.mubr.f32.mxu0 0.0
        %838 = vmatmul.mubr.f32.gmra.mxu0 %v711
        %v839 = vpop.f32.mrf.mxu0
        %v840 = vadd.f32 0.0, %v839
        %v841 = vpop.f32.mrf.mxu0
        %842 = vmatprep.mubr.f32.mxu0 0.0
        %843 = vmatmul.mubr.f32.gmra.mxu0 %v714
        %v844 = vpop.f32.mrf.mxu0
        %v845 = vadd.f32 0.0, %v844
        %v846 = vpop.f32.mrf.mxu0
        %847 = vmatprep.mubr.f32.mxu0 0.0
        %848 = vmatmul.mubr.f32.gmra.mxu0 %v717
        %v849 = vpop.f32.mrf.mxu0
        %v850 = vadd.f32 0.0, %v849
        %v851 = vpop.f32.mrf.mxu0
        %852 = vmatprep.mubr.f32.mxu0 0.0
        %853 = vmatmul.mubr.f32.gmra.mxu0 %v720
        %v854 = vpop.f32.mrf.mxu0
        %v855 = vadd.f32 0.0, %v854
        %v856 = vpop.f32.mrf.mxu0
        %857 = vmatprep.mubr.f32.mxu0 0.0
        %858 = vmatmul.mubr.f32.gmra.mxu0 %v723
        %v859 = vpop.f32.mrf.mxu0
        %v860 = vadd.f32 0.0, %v859
        %v861 = vpop.f32.mrf.mxu0
        %862 = vdwg.mxu0
        %v863 = vadd.f32 %v667, %v795
        %v864 = vadd.f32 %v668, %v800
        %v865 = vadd.f32 %v669, %v805
        %v866 = vadd.f32 %v670, %v810
        %v867 = vadd.f32 %v671, %v815
        %v868 = vadd.f32 %v672, %v820
        %v869 = vadd.f32 %v673, %v825
        %v870 = vadd.f32 %v674, %v830
        %v871 = vadd.f32 %v675, %v835
        %v872 = vadd.f32 %v676, %v840
        %v873 = vadd.f32 %v677, %v845
        %v874 = vadd.f32 %v678, %v850
        %v875 = vadd.f32 %v679, %v855
        %v876 = vadd.f32 %v680, %v860
        %877 = vst [vmem:[#allocation2] sm:$0xff] %v863
        %878 = vst [vmem:[#allocation2 + $0x8] sm:$0xff] %v864
        %879 = vst [vmem:[#allocation2 + $0x10] sm:$0xff] %v865
        %880 = vst [vmem:[#allocation2 + $0x18] sm:$0xff] %v866
        %881 = vst [vmem:[#allocation2 + $0x20] sm:$0xff] %v867
        %882 = vst [vmem:[#allocation2 + $0x28] sm:$0xff] %v868
        %883 = vst [vmem:[#allocation2 + $0x30] sm:$0xff] %v869
        %884 = vst [vmem:[#allocation2 + $0x38] sm:$0xff] %v870
        %885 = vst [vmem:[#allocation2 + $0x40] sm:$0xff] %v871
        %886 = vst [vmem:[#allocation2 + $0x48] sm:$0xff] %v872
        %887 = vst [vmem:[#allocation2 + $0x50] sm:$0xff] %v873
        %888 = vst [vmem:[#allocation2 + $0x58] sm:$0xff] %v874
        %889 = vst [vmem:[#allocation2 + $0x60] sm:$0xff] %v875
        %890 = vst [vmem:[#allocation2 + $0x68] sm:$0xff] %v876
        %v891 = vld [vmem:[%s155 + $0x10] sm:$0xff]
        %v892 = vld [vmem:[%s155 + $0x18] sm:$0xff]
        %v893 = vld [vmem:[%s155 + $0x20] sm:$0xff]
        %v894 = vld [vmem:[%s155 + $0x28] sm:$0xff]
        %v895 = vld [vmem:[%s155 + $0x30] sm:$0xff]
        %v896 = vld [vmem:[%s155 + $0x38] sm:$0xff]
        %v897 = vld [vmem:[%s155 + $0x40] sm:$0xff]
        %v898 = vld [vmem:[%s155 + $0x48] sm:$0xff]
        %v899 = vld [vmem:[%s155 + $0x50] sm:$0xff]
        %v900 = vld [vmem:[%s155 + $0x58] sm:$0xff]
        %v901 = vld [vmem:[%s155 + $0x60] sm:$0xff]
        %v902 = vld [vmem:[%s155 + $0x68] sm:$0xff]
        %v903 = vld [vmem:[%s155 + $0x70] sm:$0xff]
        %v904 = vld [vmem:[%s155 + $0x78] sm:$0xff]
        %v905 = vld [vmem:[#allocation2] sm:$0xff]
        %v906 = vld [vmem:[#allocation2 + $0x8] sm:$0xff]
        %v907 = vld [vmem:[#allocation2 + $0x10] sm:$0xff]
        %v908 = vld [vmem:[#allocation2 + $0x18] sm:$0xff]
        %v909 = vld [vmem:[#allocation2 + $0x20] sm:$0xff]
        %v910 = vld [vmem:[#allocation2 + $0x28] sm:$0xff]
        %v911 = vld [vmem:[#allocation2 + $0x30] sm:$0xff]
        %v912 = vld [vmem:[#allocation2 + $0x38] sm:$0xff]
        %v913 = vld [vmem:[#allocation2 + $0x40] sm:$0xff]
        %v914 = vld [vmem:[#allocation2 + $0x48] sm:$0xff]
        %v915 = vld [vmem:[#allocation2 + $0x50] sm:$0xff]
        %v916 = vld [vmem:[#allocation2 + $0x58] sm:$0xff]
        %v917 = vld [vmem:[#allocation2 + $0x60] sm:$0xff]
        %v918 = vld [vmem:[#allocation2 + $0x68] sm:$0xff]
        %s919 = scalar_lea.vmem %s1, 12
        %v920 = vld [vmem:[%s919] sm:$0xf]
        %v922 = vsel %vm205, %v891, 0
        %v925 = vsel %vm205, %v892, 0
        %v928 = vsel %vm205, %v893, 0
        %v931 = vsel %vm205, %v894, 0
        %v934 = vsel %vm205, %v895, 0
        %v937 = vsel %vm205, %v896, 0
        %v940 = vsel %vm205, %v897, 0
        %v943 = vsel %vm205, %v898, 0
        %v946 = vsel %vm205, %v899, 0
        %v949 = vsel %vm205, %v900, 0
        %v952 = vsel %vm205, %v901, 0
        %v955 = vsel %vm205, %v902, 0
        %v958 = vsel %vm205, %v903, 0
        %v961 = vsel %vm205, %v904, 0
        %v964 = vsel %vm248, %v920, 0
        %966 = vmatprep.subr.mxu0 0.0
        %967 = vmatpush1.msra.mxu0 0.0
        %968 = vmatprep.subr.mxu0 0.0
        %969 = vmatpush1.msra.mxu0 0.0
        %970 = vmatprep.subr.mxu0 0.0
        %971 = vmatpush1.msra.mxu0 0.0
        %972 = vmatprep.subr.mxu0 0.0
        %973 = vmatpush1.msra.mxu0 0.0
        %974 = vmatprep.subr.mxu0 0.0
        %975 = vmatpush1.msra.mxu0 0.0
        %976 = vmatprep.subr.mxu0 0.0
        %977 = vmatpush1.msra.mxu0 0.0
        %978 = vmatprep.subr.mxu0 0.0
        %979 = vmatpush1.msra.mxu0 0.0
        %980 = vmatprep.subr.mxu0 0.0
        %981 = vmatpush1.msra.mxu0 0.0
        %982 = vmatprep.subr.mxu0 0.0
        %983 = vmatpush1.msra.mxu0 0.0
        %984 = vmatprep.subr.mxu0 0.0
        %985 = vmatpush1.msra.mxu0 0.0
        %986 = vmatprep.subr.mxu0 0.0
        %987 = vmatpush1.msra.mxu0 0.0
        %988 = vmatprep.subr.mxu0 0.0
        %989 = vmatpush1.msra.mxu0 0.0
        %990 = vmatprep.subr.mxu0 0.0
        %991 = vmatpush1.msra.mxu0 0.0
        %992 = vmatprep.subr.mxu0 0.0
        %993 = vmatpush1.msra.mxu0 0.0
        %994 = vmatprep.subr.mxu0 0.0
        %995 = vmatpush1.msra.mxu0 0.0
        %996 = vmatprep.subr.mxu0 0.0
        %997 = vmatpush1.msra.mxu0 %v964
        %998 = vmatprep.subr.mxu0 0.0
        %999 = vmatpush2.msra.mxu0 0.0
        %1000 = vmatprep.subr.mxu0 0.0
        %1001 = vmatpush2.msra.mxu0 0.0
        %1002 = vmatprep.subr.mxu0 0.0
        %1003 = vmatpush2.msra.mxu0 0.0
        %1004 = vmatprep.subr.mxu0 0.0
        %1005 = vmatpush2.msra.mxu0 0.0
        %1006 = vmatprep.subr.mxu0 0.0
        %1007 = vmatpush2.msra.mxu0 0.0
        %1008 = vmatprep.subr.mxu0 0.0
        %1009 = vmatpush2.msra.mxu0 0.0
        %1010 = vmatprep.subr.mxu0 0.0
        %1011 = vmatpush2.msra.mxu0 0.0
        %1012 = vmatprep.subr.mxu0 0.0
        %1013 = vmatpush2.msra.mxu0 0.0
        %1014 = vmatprep.subr.mxu0 0.0
        %1015 = vmatpush2.msra.mxu0 0.0
        %1016 = vmatprep.subr.mxu0 0.0
        %1017 = vmatpush2.msra.mxu0 0.0
        %1018 = vmatprep.subr.mxu0 0.0
        %1019 = vmatpush2.msra.mxu0 0.0
        %1020 = vmatprep.subr.mxu0 0.0
        %1021 = vmatpush2.msra.mxu0 0.0
        %1022 = vmatprep.subr.mxu0 0.0
        %1023 = vmatpush2.msra.mxu0 0.0
        %1024 = vmatprep.subr.mxu0 0.0
        %1025 = vmatpush2.msra.mxu0 0.0
        %1026 = vmatprep.subr.mxu0 0.0
        %1027 = vmatpush2.msra.mxu0 0.0
        %1028 = vmatprep.subr.mxu0 0.0
        %1029 = vmatpush2.msra.mxu0 0.0
        %1030 = vmatprep.mubr.f32.mxu0 0.0
        %1031 = vmatmul.mubr.f32.gmra.mxu0 %v922
        %v1032 = vpop.f32.mrf.mxu0
        %v1033 = vadd.f32 0.0, %v1032
        %v1034 = vpop.f32.mrf.mxu0
        %1035 = vmatprep.mubr.f32.mxu0 0.0
        %1036 = vmatmul.mubr.f32.gmra.mxu0 %v925
        %v1037 = vpop.f32.mrf.mxu0
        %v1038 = vadd.f32 0.0, %v1037
        %v1039 = vpop.f32.mrf.mxu0
        %1040 = vmatprep.mubr.f32.mxu0 0.0
        %1041 = vmatmul.mubr.f32.gmra.mxu0 %v928
        %v1042 = vpop.f32.mrf.mxu0
        %v1043 = vadd.f32 0.0, %v1042
        %v1044 = vpop.f32.mrf.mxu0
        %1045 = vmatprep.mubr.f32.mxu0 0.0
        %1046 = vmatmul.mubr.f32.gmra.mxu0 %v931
        %v1047 = vpop.f32.mrf.mxu0
        %v1048 = vadd.f32 0.0, %v1047
        %v1049 = vpop.f32.mrf.mxu0
        %1050 = vmatprep.mubr.f32.mxu0 0.0
        %1051 = vmatmul.mubr.f32.gmra.mxu0 %v934
        %v1052 = vpop.f32.mrf.mxu0
        %v1053 = vadd.f32 0.0, %v1052
        %v1054 = vpop.f32.mrf.mxu0
        %1055 = vmatprep.mubr.f32.mxu0 0.0
        %1056 = vmatmul.mubr.f32.gmra.mxu0 %v937
        %v1057 = vpop.f32.mrf.mxu0
        %v1058 = vadd.f32 0.0, %v1057
        %v1059 = vpop.f32.mrf.mxu0
        %1060 = vmatprep.mubr.f32.mxu0 0.0
        %1061 = vmatmul.mubr.f32.gmra.mxu0 %v940
        %v1062 = vpop.f32.mrf.mxu0
        %v1063 = vadd.f32 0.0, %v1062
        %v1064 = vpop.f32.mrf.mxu0
        %1065 = vmatprep.mubr.f32.mxu0 0.0
        %1066 = vmatmul.mubr.f32.gmra.mxu0 %v943
        %v1067 = vpop.f32.mrf.mxu0
        %v1068 = vadd.f32 0.0, %v1067
        %v1069 = vpop.f32.mrf.mxu0
        %1070 = vmatprep.mubr.f32.mxu0 0.0
        %1071 = vmatmul.mubr.f32.gmra.mxu0 %v946
        %v1072 = vpop.f32.mrf.mxu0
        %v1073 = vadd.f32 0.0, %v1072
        %v1074 = vpop.f32.mrf.mxu0
        %1075 = vmatprep.mubr.f32.mxu0 0.0
        %1076 = vmatmul.mubr.f32.gmra.mxu0 %v949
        %v1077 = vpop.f32.mrf.mxu0
        %v1078 = vadd.f32 0.0, %v1077
        %v1079 = vpop.f32.mrf.mxu0
        %1080 = vmatprep.mubr.f32.mxu0 0.0
        %1081 = vmatmul.mubr.f32.gmra.mxu0 %v952
        %v1082 = vpop.f32.mrf.mxu0
        %v1083 = vadd.f32 0.0, %v1082
        %v1084 = vpop.f32.mrf.mxu0
        %1085 = vmatprep.mubr.f32.mxu0 0.0
        %1086 = vmatmul.mubr.f32.gmra.mxu0 %v955
        %v1087 = vpop.f32.mrf.mxu0
        %v1088 = vadd.f32 0.0, %v1087
        %v1089 = vpop.f32.mrf.mxu0
        %1090 = vmatprep.mubr.f32.mxu0 0.0
        %1091 = vmatmul.mubr.f32.gmra.mxu0 %v958
        %v1092 = vpop.f32.mrf.mxu0
        %v1093 = vadd.f32 0.0, %v1092
        %v1094 = vpop.f32.mrf.mxu0
        %1095 = vmatprep.mubr.f32.mxu0 0.0
        %1096 = vmatmul.mubr.f32.gmra.mxu0 %v961
        %v1097 = vpop.f32.mrf.mxu0
        %v1098 = vadd.f32 0.0, %v1097
        %v1099 = vpop.f32.mrf.mxu0
        %1100 = vdwg.mxu0
        %v1101 = vadd.f32 %v905, %v1033
        %v1102 = vadd.f32 %v906, %v1038
        %v1103 = vadd.f32 %v907, %v1043
        %v1104 = vadd.f32 %v908, %v1048
        %v1105 = vadd.f32 %v909, %v1053
        %v1106 = vadd.f32 %v910, %v1058
        %v1107 = vadd.f32 %v911, %v1063
        %v1108 = vadd.f32 %v912, %v1068
        %v1109 = vadd.f32 %v913, %v1073
        %v1110 = vadd.f32 %v914, %v1078
        %v1111 = vadd.f32 %v915, %v1083
        %v1112 = vadd.f32 %v916, %v1088
        %v1113 = vadd.f32 %v917, %v1093
        %v1114 = vadd.f32 %v918, %v1098
        %1115 = vst [vmem:[#allocation2] sm:$0xff] %v1101
        %1116 = vst [vmem:[#allocation2 + $0x8] sm:$0xff] %v1102
        %1117 = vst [vmem:[#allocation2 + $0x10] sm:$0xff] %v1103
        %1118 = vst [vmem:[#allocation2 + $0x18] sm:$0xff] %v1104
        %1119 = vst [vmem:[#allocation2 + $0x20] sm:$0xff] %v1105
        %1120 = vst [vmem:[#allocation2 + $0x28] sm:$0xff] %v1106
        %1121 = vst [vmem:[#allocation2 + $0x30] sm:$0xff] %v1107
        %1122 = vst [vmem:[#allocation2 + $0x38] sm:$0xff] %v1108
        %1123 = vst [vmem:[#allocation2 + $0x40] sm:$0xff] %v1109
        %1124 = vst [vmem:[#allocation2 + $0x48] sm:$0xff] %v1110
        %1125 = vst [vmem:[#allocation2 + $0x50] sm:$0xff] %v1111
        %1126 = vst [vmem:[#allocation2 + $0x58] sm:$0xff] %v1112
        %1127 = vst [vmem:[#allocation2 + $0x60] sm:$0xff] %v1113
        %1128 = vst [vmem:[#allocation2 + $0x68] sm:$0xff] %v1114
        %v1129 = vld [vmem:[%s155 + $0x11] sm:$0xff]
        %v1130 = vld [vmem:[%s155 + $0x19] sm:$0xff]
        %v1131 = vld [vmem:[%s155 + $0x21] sm:$0xff]
        %v1132 = vld [vmem:[%s155 + $0x29] sm:$0xff]
        %v1133 = vld [vmem:[%s155 + $0x31] sm:$0xff]
        %v1134 = vld [vmem:[%s155 + $0x39] sm:$0xff]
        %v1135 = vld [vmem:[%s155 + $0x41] sm:$0xff]
        %v1136 = vld [vmem:[%s155 + $0x49] sm:$0xff]
        %v1137 = vld [vmem:[%s155 + $0x51] sm:$0xff]
        %v1138 = vld [vmem:[%s155 + $0x59] sm:$0xff]
        %v1139 = vld [vmem:[%s155 + $0x61] sm:$0xff]
        %v1140 = vld [vmem:[%s155 + $0x69] sm:$0xff]
        %v1141 = vld [vmem:[%s155 + $0x71] sm:$0xff]
        %v1142 = vld [vmem:[%s155 + $0x79] sm:$0xff]
        %v1143 = vld [vmem:[#allocation2] sm:$0xff]
        %v1144 = vld [vmem:[#allocation2 + $0x8] sm:$0xff]
        %v1145 = vld [vmem:[#allocation2 + $0x10] sm:$0xff]
        %v1146 = vld [vmem:[#allocation2 + $0x18] sm:$0xff]
        %v1147 = vld [vmem:[#allocation2 + $0x20] sm:$0xff]
        %v1148 = vld [vmem:[#allocation2 + $0x28] sm:$0xff]
        %v1149 = vld [vmem:[#allocation2 + $0x30] sm:$0xff]
        %v1150 = vld [vmem:[#allocation2 + $0x38] sm:$0xff]
        %v1151 = vld [vmem:[#allocation2 + $0x40] sm:$0xff]
        %v1152 = vld [vmem:[#allocation2 + $0x48] sm:$0xff]
        %v1153 = vld [vmem:[#allocation2 + $0x50] sm:$0xff]
        %v1154 = vld [vmem:[#allocation2 + $0x58] sm:$0xff]
        %v1155 = vld [vmem:[#allocation2 + $0x60] sm:$0xff]
        %v1156 = vld [vmem:[#allocation2 + $0x68] sm:$0xff]
        %s1157 = scalar_lea.vmem %s1, 16
        %v1158 = vld [vmem:[%s1157] sm:$0xf]
        %v1160 = vsel %vm205, %v1129, 0
        %v1163 = vsel %vm205, %v1130, 0
        %v1166 = vsel %vm205, %v1131, 0
        %v1169 = vsel %vm205, %v1132, 0
        %v1172 = vsel %vm205, %v1133, 0
        %v1175 = vsel %vm205, %v1134, 0
        %v1178 = vsel %vm205, %v1135, 0
        %v1181 = vsel %vm205, %v1136, 0
        %v1184 = vsel %vm205, %v1137, 0
        %v1187 = vsel %vm205, %v1138, 0
        %v1190 = vsel %vm205, %v1139, 0
        %v1193 = vsel %vm205, %v1140, 0
        %v1196 = vsel %vm205, %v1141, 0
        %v1199 = vsel %vm205, %v1142, 0
        %v1202 = vsel %vm248, %v1158, 0
        %1204 = vmatprep.subr.mxu0 0.0
        %1205 = vmatpush1.msra.mxu0 0.0
        %1206 = vmatprep.subr.mxu0 0.0
        %1207 = vmatpush1.msra.mxu0 0.0
        %1208 = vmatprep.subr.mxu0 0.0
        %1209 = vmatpush1.msra.mxu0 0.0
        %1210 = vmatprep.subr.mxu0 0.0
        %1211 = vmatpush1.msra.mxu0 0.0
        %1212 = vmatprep.subr.mxu0 0.0
        %1213 = vmatpush1.msra.mxu0 0.0
        %1214 = vmatprep.subr.mxu0 0.0
        %1215 = vmatpush1.msra.mxu0 0.0
        %1216 = vmatprep.subr.mxu0 0.0
        %1217 = vmatpush1.msra.mxu0 0.0
        %1218 = vmatprep.subr.mxu0 0.0
        %1219 = vmatpush1.msra.mxu0 0.0
        %1220 = vmatprep.subr.mxu0 0.0
        %1221 = vmatpush1.msra.mxu0 0.0
        %1222 = vmatprep.subr.mxu0 0.0
        %1223 = vmatpush1.msra.mxu0 0.0
        %1224 = vmatprep.subr.mxu0 0.0
        %1225 = vmatpush1.msra.mxu0 0.0
        %1226 = vmatprep.subr.mxu0 0.0
        %1227 = vmatpush1.msra.mxu0 0.0
        %1228 = vmatprep.subr.mxu0 0.0
        %1229 = vmatpush1.msra.mxu0 0.0
        %1230 = vmatprep.subr.mxu0 0.0
        %1231 = vmatpush1.msra.mxu0 0.0
        %1232 = vmatprep.subr.mxu0 0.0
        %1233 = vmatpush1.msra.mxu0 0.0
        %1234 = vmatprep.subr.mxu0 0.0
        %1235 = vmatpush1.msra.mxu0 %v1202
        %1236 = vmatprep.subr.mxu0 0.0
        %1237 = vmatpush2.msra.mxu0 0.0
        %1238 = vmatprep.subr.mxu0 0.0
        %1239 = vmatpush2.msra.mxu0 0.0
        %1240 = vmatprep.subr.mxu0 0.0
        %1241 = vmatpush2.msra.mxu0 0.0
        %1242 = vmatprep.subr.mxu0 0.0
        %1243 = vmatpush2.msra.mxu0 0.0
        %1244 = vmatprep.subr.mxu0 0.0
        %1245 = vmatpush2.msra.mxu0 0.0
        %1246 = vmatprep.subr.mxu0 0.0
        %1247 = vmatpush2.msra.mxu0 0.0
        %1248 = vmatprep.subr.mxu0 0.0
        %1249 = vmatpush2.msra.mxu0 0.0
        %1250 = vmatprep.subr.mxu0 0.0
        %1251 = vmatpush2.msra.mxu0 0.0
        %1252 = vmatprep.subr.mxu0 0.0
        %1253 = vmatpush2.msra.mxu0 0.0
        %1254 = vmatprep.subr.mxu0 0.0
        %1255 = vmatpush2.msra.mxu0 0.0
        %1256 = vmatprep.subr.mxu0 0.0
        %1257 = vmatpush2.msra.mxu0 0.0
        %1258 = vmatprep.subr.mxu0 0.0
        %1259 = vmatpush2.msra.mxu0 0.0
        %1260 = vmatprep.subr.mxu0 0.0
        %1261 = vmatpush2.msra.mxu0 0.0
        %1262 = vmatprep.subr.mxu0 0.0
        %1263 = vmatpush2.msra.mxu0 0.0
        %1264 = vmatprep.subr.mxu0 0.0
        %1265 = vmatpush2.msra.mxu0 0.0
        %1266 = vmatprep.subr.mxu0 0.0
        %1267 = vmatpush2.msra.mxu0 0.0
        %1268 = vmatprep.mubr.f32.mxu0 0.0
        %1269 = vmatmul.mubr.f32.gmra.mxu0 %v1160
        %v1270 = vpop.f32.mrf.mxu0
        %v1271 = vadd.f32 0.0, %v1270
        %v1272 = vpop.f32.mrf.mxu0
        %1273 = vmatprep.mubr.f32.mxu0 0.0
        %1274 = vmatmul.mubr.f32.gmra.mxu0 %v1163
        %v1275 = vpop.f32.mrf.mxu0
        %v1276 = vadd.f32 0.0, %v1275
        %v1277 = vpop.f32.mrf.mxu0
        %1278 = vmatprep.mubr.f32.mxu0 0.0
        %1279 = vmatmul.mubr.f32.gmra.mxu0 %v1166
        %v1280 = vpop.f32.mrf.mxu0
        %v1281 = vadd.f32 0.0, %v1280
        %v1282 = vpop.f32.mrf.mxu0
        %1283 = vmatprep.mubr.f32.mxu0 0.0
        %1284 = vmatmul.mubr.f32.gmra.mxu0 %v1169
        %v1285 = vpop.f32.mrf.mxu0
        %v1286 = vadd.f32 0.0, %v1285
        %v1287 = vpop.f32.mrf.mxu0
        %1288 = vmatprep.mubr.f32.mxu0 0.0
        %1289 = vmatmul.mubr.f32.gmra.mxu0 %v1172
        %v1290 = vpop.f32.mrf.mxu0
        %v1291 = vadd.f32 0.0, %v1290
        %v1292 = vpop.f32.mrf.mxu0
        %1293 = vmatprep.mubr.f32.mxu0 0.0
        %1294 = vmatmul.mubr.f32.gmra.mxu0 %v1175
        %v1295 = vpop.f32.mrf.mxu0
        %v1296 = vadd.f32 0.0, %v1295
        %v1297 = vpop.f32.mrf.mxu0
        %1298 = vmatprep.mubr.f32.mxu0 0.0
        %1299 = vmatmul.mubr.f32.gmra.mxu0 %v1178
        %v1300 = vpop.f32.mrf.mxu0
        %v1301 = vadd.f32 0.0, %v1300
        %v1302 = vpop.f32.mrf.mxu0
        %1303 = vmatprep.mubr.f32.mxu0 0.0
        %1304 = vmatmul.mubr.f32.gmra.mxu0 %v1181
        %v1305 = vpop.f32.mrf.mxu0
        %v1306 = vadd.f32 0.0, %v1305
        %v1307 = vpop.f32.mrf.mxu0
        %1308 = vmatprep.mubr.f32.mxu0 0.0
        %1309 = vmatmul.mubr.f32.gmra.mxu0 %v1184
        %v1310 = vpop.f32.mrf.mxu0
        %v1311 = vadd.f32 0.0, %v1310
        %v1312 = vpop.f32.mrf.mxu0
        %1313 = vmatprep.mubr.f32.mxu0 0.0
        %1314 = vmatmul.mubr.f32.gmra.mxu0 %v1187
        %v1315 = vpop.f32.mrf.mxu0
        %v1316 = vadd.f32 0.0, %v1315
        %v1317 = vpop.f32.mrf.mxu0
        %1318 = vmatprep.mubr.f32.mxu0 0.0
        %1319 = vmatmul.mubr.f32.gmra.mxu0 %v1190
        %v1320 = vpop.f32.mrf.mxu0
        %v1321 = vadd.f32 0.0, %v1320
        %v1322 = vpop.f32.mrf.mxu0
        %1323 = vmatprep.mubr.f32.mxu0 0.0
        %1324 = vmatmul.mubr.f32.gmra.mxu0 %v1193
        %v1325 = vpop.f32.mrf.mxu0
        %v1326 = vadd.f32 0.0, %v1325
        %v1327 = vpop.f32.mrf.mxu0
        %1328 = vmatprep.mubr.f32.mxu0 0.0
        %1329 = vmatmul.mubr.f32.gmra.mxu0 %v1196
        %v1330 = vpop.f32.mrf.mxu0
        %v1331 = vadd.f32 0.0, %v1330
        %v1332 = vpop.f32.mrf.mxu0
        %1333 = vmatprep.mubr.f32.mxu0 0.0
        %1334 = vmatmul.mubr.f32.gmra.mxu0 %v1199
        %v1335 = vpop.f32.mrf.mxu0
        %v1336 = vadd.f32 0.0, %v1335
        %v1337 = vpop.f32.mrf.mxu0
        %1338 = vdwg.mxu0
        %v1339 = vadd.f32 %v1143, %v1271
        %v1340 = vadd.f32 %v1144, %v1276
        %v1341 = vadd.f32 %v1145, %v1281
        %v1342 = vadd.f32 %v1146, %v1286
        %v1343 = vadd.f32 %v1147, %v1291
        %v1344 = vadd.f32 %v1148, %v1296
        %v1345 = vadd.f32 %v1149, %v1301
        %v1346 = vadd.f32 %v1150, %v1306
        %v1347 = vadd.f32 %v1151, %v1311
        %v1348 = vadd.f32 %v1152, %v1316
        %v1349 = vadd.f32 %v1153, %v1321
        %v1350 = vadd.f32 %v1154, %v1326
        %v1351 = vadd.f32 %v1155, %v1331
        %v1352 = vadd.f32 %v1156, %v1336
        %1353 = vst [vmem:[#allocation2] sm:$0xff] %v1339
        %1354 = vst [vmem:[#allocation2 + $0x8] sm:$0xff] %v1340
        %1355 = vst [vmem:[#allocation2 + $0x10] sm:$0xff] %v1341
        %1356 = vst [vmem:[#allocation2 + $0x18] sm:$0xff] %v1342
        %1357 = vst [vmem:[#allocation2 + $0x20] sm:$0xff] %v1343
        %1358 = vst [vmem:[#allocation2 + $0x28] sm:$0xff] %v1344
        %1359 = vst [vmem:[#allocation2 + $0x30] sm:$0xff] %v1345
        %1360 = vst [vmem:[#allocation2 + $0x38] sm:$0xff] %v1346
        %1361 = vst [vmem:[#allocation2 + $0x40] sm:$0xff] %v1347
        %1362 = vst [vmem:[#allocation2 + $0x48] sm:$0xff] %v1348
        %1363 = vst [vmem:[#allocation2 + $0x50] sm:$0xff] %v1349
        %1364 = vst [vmem:[#allocation2 + $0x58] sm:$0xff] %v1350
        %1365 = vst [vmem:[#allocation2 + $0x60] sm:$0xff] %v1351
        %1366 = vst [vmem:[#allocation2 + $0x68] sm:$0xff] %v1352
        %v1367 = vld [vmem:[%s155 + $0x12] sm:$0xff]
        %v1368 = vld [vmem:[%s155 + $0x1a] sm:$0xff]
        %v1369 = vld [vmem:[%s155 + $0x22] sm:$0xff]
        %v1370 = vld [vmem:[%s155 + $0x2a] sm:$0xff]
        %v1371 = vld [vmem:[%s155 + $0x32] sm:$0xff]
        %v1372 = vld [vmem:[%s155 + $0x3a] sm:$0xff]
        %v1373 = vld [vmem:[%s155 + $0x42] sm:$0xff]
        %v1374 = vld [vmem:[%s155 + $0x4a] sm:$0xff]
        %v1375 = vld [vmem:[%s155 + $0x52] sm:$0xff]
        %v1376 = vld [vmem:[%s155 + $0x5a] sm:$0xff]
        %v1377 = vld [vmem:[%s155 + $0x62] sm:$0xff]
        %v1378 = vld [vmem:[%s155 + $0x6a] sm:$0xff]
        %v1379 = vld [vmem:[%s155 + $0x72] sm:$0xff]
        %v1380 = vld [vmem:[%s155 + $0x7a] sm:$0xff]
        %v1381 = vld [vmem:[#allocation2] sm:$0xff]
        %v1382 = vld [vmem:[#allocation2 + $0x8] sm:$0xff]
        %v1383 = vld [vmem:[#allocation2 + $0x10] sm:$0xff]
        %v1384 = vld [vmem:[#allocation2 + $0x18] sm:$0xff]
        %v1385 = vld [vmem:[#allocation2 + $0x20] sm:$0xff]
        %v1386 = vld [vmem:[#allocation2 + $0x28] sm:$0xff]
        %v1387 = vld [vmem:[#allocation2 + $0x30] sm:$0xff]
        %v1388 = vld [vmem:[#allocation2 + $0x38] sm:$0xff]
        %v1389 = vld [vmem:[#allocation2 + $0x40] sm:$0xff]
        %v1390 = vld [vmem:[#allocation2 + $0x48] sm:$0xff]
        %v1391 = vld [vmem:[#allocation2 + $0x50] sm:$0xff]
        %v1392 = vld [vmem:[#allocation2 + $0x58] sm:$0xff]
        %v1393 = vld [vmem:[#allocation2 + $0x60] sm:$0xff]
        %v1394 = vld [vmem:[#allocation2 + $0x68] sm:$0xff]
        %s1395 = scalar_lea.vmem %s1, 20
        %v1396 = vld [vmem:[%s1395] sm:$0xf]
        %v1398 = vsel %vm205, %v1367, 0
        %v1401 = vsel %vm205, %v1368, 0
        %v1404 = vsel %vm205, %v1369, 0
        %v1407 = vsel %vm205, %v1370, 0
        %v1410 = vsel %vm205, %v1371, 0
        %v1413 = vsel %vm205, %v1372, 0
        %v1416 = vsel %vm205, %v1373, 0
        %v1419 = vsel %vm205, %v1374, 0
        %v1422 = vsel %vm205, %v1375, 0
        %v1425 = vsel %vm205, %v1376, 0
        %v1428 = vsel %vm205, %v1377, 0
        %v1431 = vsel %vm205, %v1378, 0
        %v1434 = vsel %vm205, %v1379, 0
        %v1437 = vsel %vm205, %v1380, 0
        %v1440 = vsel %vm248, %v1396, 0
        %1442 = vmatprep.subr.mxu0 0.0
        %1443 = vmatpush1.msra.mxu0 0.0
        %1444 = vmatprep.subr.mxu0 0.0
        %1445 = vmatpush1.msra.mxu0 0.0
        %1446 = vmatprep.subr.mxu0 0.0
        %1447 = vmatpush1.msra.mxu0 0.0
        %1448 = vmatprep.subr.mxu0 0.0
        %1449 = vmatpush1.msra.mxu0 0.0
        %1450 = vmatprep.subr.mxu0 0.0
        %1451 = vmatpush1.msra.mxu0 0.0
        %1452 = vmatprep.subr.mxu0 0.0
        %1453 = vmatpush1.msra.mxu0 0.0
        %1454 = vmatprep.subr.mxu0 0.0
        %1455 = vmatpush1.msra.mxu0 0.0
        %1456 = vmatprep.subr.mxu0 0.0
        %1457 = vmatpush1.msra.mxu0 0.0
        %1458 = vmatprep.subr.mxu0 0.0
        %1459 = vmatpush1.msra.mxu0 0.0
        %1460 = vmatprep.subr.mxu0 0.0
        %1461 = vmatpush1.msra.mxu0 0.0
        %1462 = vmatprep.subr.mxu0 0.0
        %1463 = vmatpush1.msra.mxu0 0.0
        %1464 = vmatprep.subr.mxu0 0.0
        %1465 = vmatpush1.msra.mxu0 0.0
        %1466 = vmatprep.subr.mxu0 0.0
        %1467 = vmatpush1.msra.mxu0 0.0
        %1468 = vmatprep.subr.mxu0 0.0
        %1469 = vmatpush1.msra.mxu0 0.0
        %1470 = vmatprep.subr.mxu0 0.0
        %1471 = vmatpush1.msra.mxu0 0.0
        %1472 = vmatprep.subr.mxu0 0.0
        %1473 = vmatpush1.msra.mxu0 %v1440
        %1474 = vmatprep.subr.mxu0 0.0
        %1475 = vmatpush2.msra.mxu0 0.0
        %1476 = vmatprep.subr.mxu0 0.0
        %1477 = vmatpush2.msra.mxu0 0.0
        %1478 = vmatprep.subr.mxu0 0.0
        %1479 = vmatpush2.msra.mxu0 0.0
        %1480 = vmatprep.subr.mxu0 0.0
        %1481 = vmatpush2.msra.mxu0 0.0
        %1482 = vmatprep.subr.mxu0 0.0
        %1483 = vmatpush2.msra.mxu0 0.0
        %1484 = vmatprep.subr.mxu0 0.0
        %1485 = vmatpush2.msra.mxu0 0.0
        %1486 = vmatprep.subr.mxu0 0.0
        %1487 = vmatpush2.msra.mxu0 0.0
        %1488 = vmatprep.subr.mxu0 0.0
        %1489 = vmatpush2.msra.mxu0 0.0
        %1490 = vmatprep.subr.mxu0 0.0
        %1491 = vmatpush2.msra.mxu0 0.0
        %1492 = vmatprep.subr.mxu0 0.0
        %1493 = vmatpush2.msra.mxu0 0.0
        %1494 = vmatprep.subr.mxu0 0.0
        %1495 = vmatpush2.msra.mxu0 0.0
        %1496 = vmatprep.subr.mxu0 0.0
        %1497 = vmatpush2.msra.mxu0 0.0
        %1498 = vmatprep.subr.mxu0 0.0
        %1499 = vmatpush2.msra.mxu0 0.0
        %1500 = vmatprep.subr.mxu0 0.0
        %1501 = vmatpush2.msra.mxu0 0.0
        %1502 = vmatprep.subr.mxu0 0.0
        %1503 = vmatpush2.msra.mxu0 0.0
        %1504 = vmatprep.subr.mxu0 0.0
        %1505 = vmatpush2.msra.mxu0 0.0
        %1506 = vmatprep.mubr.f32.mxu0 0.0
        %1507 = vmatmul.mubr.f32.gmra.mxu0 %v1398
        %v1508 = vpop.f32.mrf.mxu0
        %v1509 = vadd.f32 0.0, %v1508
        %v1510 = vpop.f32.mrf.mxu0
        %1511 = vmatprep.mubr.f32.mxu0 0.0
        %1512 = vmatmul.mubr.f32.gmra.mxu0 %v1401
        %v1513 = vpop.f32.mrf.mxu0
        %v1514 = vadd.f32 0.0, %v1513
        %v1515 = vpop.f32.mrf.mxu0
        %1516 = vmatprep.mubr.f32.mxu0 0.0
        %1517 = vmatmul.mubr.f32.gmra.mxu0 %v1404
        %v1518 = vpop.f32.mrf.mxu0
        %v1519 = vadd.f32 0.0, %v1518
        %v1520 = vpop.f32.mrf.mxu0
        %1521 = vmatprep.mubr.f32.mxu0 0.0
        %1522 = vmatmul.mubr.f32.gmra.mxu0 %v1407
        %v1523 = vpop.f32.mrf.mxu0
        %v1524 = vadd.f32 0.0, %v1523
        %v1525 = vpop.f32.mrf.mxu0
        %1526 = vmatprep.mubr.f32.mxu0 0.0
        %1527 = vmatmul.mubr.f32.gmra.mxu0 %v1410
        %v1528 = vpop.f32.mrf.mxu0
        %v1529 = vadd.f32 0.0, %v1528
        %v1530 = vpop.f32.mrf.mxu0
        %1531 = vmatprep.mubr.f32.mxu0 0.0
        %1532 = vmatmul.mubr.f32.gmra.mxu0 %v1413
        %v1533 = vpop.f32.mrf.mxu0
        %v1534 = vadd.f32 0.0, %v1533
        %v1535 = vpop.f32.mrf.mxu0
        %1536 = vmatprep.mubr.f32.mxu0 0.0
        %1537 = vmatmul.mubr.f32.gmra.mxu0 %v1416
        %v1538 = vpop.f32.mrf.mxu0
        %v1539 = vadd.f32 0.0, %v1538
        %v1540 = vpop.f32.mrf.mxu0
        %1541 = vmatprep.mubr.f32.mxu0 0.0
        %1542 = vmatmul.mubr.f32.gmra.mxu0 %v1419
        %v1543 = vpop.f32.mrf.mxu0
        %v1544 = vadd.f32 0.0, %v1543
        %v1545 = vpop.f32.mrf.mxu0
        %1546 = vmatprep.mubr.f32.mxu0 0.0
        %1547 = vmatmul.mubr.f32.gmra.mxu0 %v1422
        %v1548 = vpop.f32.mrf.mxu0
        %v1549 = vadd.f32 0.0, %v1548
        %v1550 = vpop.f32.mrf.mxu0
        %1551 = vmatprep.mubr.f32.mxu0 0.0
        %1552 = vmatmul.mubr.f32.gmra.mxu0 %v1425
        %v1553 = vpop.f32.mrf.mxu0
        %v1554 = vadd.f32 0.0, %v1553
        %v1555 = vpop.f32.mrf.mxu0
        %1556 = vmatprep.mubr.f32.mxu0 0.0
        %1557 = vmatmul.mubr.f32.gmra.mxu0 %v1428
        %v1558 = vpop.f32.mrf.mxu0
        %v1559 = vadd.f32 0.0, %v1558
        %v1560 = vpop.f32.mrf.mxu0
        %1561 = vmatprep.mubr.f32.mxu0 0.0
        %1562 = vmatmul.mubr.f32.gmra.mxu0 %v1431
        %v1563 = vpop.f32.mrf.mxu0
        %v1564 = vadd.f32 0.0, %v1563
        %v1565 = vpop.f32.mrf.mxu0
        %1566 = vmatprep.mubr.f32.mxu0 0.0
        %1567 = vmatmul.mubr.f32.gmra.mxu0 %v1434
        %v1568 = vpop.f32.mrf.mxu0
        %v1569 = vadd.f32 0.0, %v1568
        %v1570 = vpop.f32.mrf.mxu0
        %1571 = vmatprep.mubr.f32.mxu0 0.0
        %1572 = vmatmul.mubr.f32.gmra.mxu0 %v1437
        %v1573 = vpop.f32.mrf.mxu0
        %v1574 = vadd.f32 0.0, %v1573
        %v1575 = vpop.f32.mrf.mxu0
        %1576 = vdwg.mxu0
        %v1577 = vadd.f32 %v1381, %v1509
        %v1578 = vadd.f32 %v1382, %v1514
        %v1579 = vadd.f32 %v1383, %v1519
        %v1580 = vadd.f32 %v1384, %v1524
        %v1581 = vadd.f32 %v1385, %v1529
        %v1582 = vadd.f32 %v1386, %v1534
        %v1583 = vadd.f32 %v1387, %v1539
        %v1584 = vadd.f32 %v1388, %v1544
        %v1585 = vadd.f32 %v1389, %v1549
        %v1586 = vadd.f32 %v1390, %v1554
        %v1587 = vadd.f32 %v1391, %v1559
        %v1588 = vadd.f32 %v1392, %v1564
        %v1589 = vadd.f32 %v1393, %v1569
        %v1590 = vadd.f32 %v1394, %v1574
        %1591 = vst [vmem:[#allocation2] sm:$0xff] %v1577
        %1592 = vst [vmem:[#allocation2 + $0x8] sm:$0xff] %v1578
        %1593 = vst [vmem:[#allocation2 + $0x10] sm:$0xff] %v1579
        %1594 = vst [vmem:[#allocation2 + $0x18] sm:$0xff] %v1580
        %1595 = vst [vmem:[#allocation2 + $0x20] sm:$0xff] %v1581
        %1596 = vst [vmem:[#allocation2 + $0x28] sm:$0xff] %v1582
        %1597 = vst [vmem:[#allocation2 + $0x30] sm:$0xff] %v1583
        %1598 = vst [vmem:[#allocation2 + $0x38] sm:$0xff] %v1584
        %1599 = vst [vmem:[#allocation2 + $0x40] sm:$0xff] %v1585
        %1600 = vst [vmem:[#allocation2 + $0x48] sm:$0xff] %v1586
        %1601 = vst [vmem:[#allocation2 + $0x50] sm:$0xff] %v1587
        %1602 = vst [vmem:[#allocation2 + $0x58] sm:$0xff] %v1588
        %1603 = vst [vmem:[#allocation2 + $0x60] sm:$0xff] %v1589
        %1604 = vst [vmem:[#allocation2 + $0x68] sm:$0xff] %v1590
        %v1605 = vld [vmem:[%s155 + $0x20] sm:$0xff]
        %v1606 = vld [vmem:[%s155 + $0x28] sm:$0xff]
        %v1607 = vld [vmem:[%s155 + $0x30] sm:$0xff]
        %v1608 = vld [vmem:[%s155 + $0x38] sm:$0xff]
        %v1609 = vld [vmem:[%s155 + $0x40] sm:$0xff]
        %v1610 = vld [vmem:[%s155 + $0x48] sm:$0xff]
        %v1611 = vld [vmem:[%s155 + $0x50] sm:$0xff]
        %v1612 = vld [vmem:[%s155 + $0x58] sm:$0xff]
        %v1613 = vld [vmem:[%s155 + $0x60] sm:$0xff]
        %v1614 = vld [vmem:[%s155 + $0x68] sm:$0xff]
        %v1615 = vld [vmem:[%s155 + $0x70] sm:$0xff]
        %v1616 = vld [vmem:[%s155 + $0x78] sm:$0xff]
        %v1617 = vld [vmem:[%s155 + $0x80] sm:$0xff]
        %v1618 = vld [vmem:[%s155 + $0x88] sm:$0xff]
        %v1619 = vld [vmem:[#allocation2] sm:$0xff]
        %v1620 = vld [vmem:[#allocation2 + $0x8] sm:$0xff]
        %v1621 = vld [vmem:[#allocation2 + $0x10] sm:$0xff]
        %v1622 = vld [vmem:[#allocation2 + $0x18] sm:$0xff]
        %v1623 = vld [vmem:[#allocation2 + $0x20] sm:$0xff]
        %v1624 = vld [vmem:[#allocation2 + $0x28] sm:$0xff]
        %v1625 = vld [vmem:[#allocation2 + $0x30] sm:$0xff]
        %v1626 = vld [vmem:[#allocation2 + $0x38] sm:$0xff]
        %v1627 = vld [vmem:[#allocation2 + $0x40] sm:$0xff]
        %v1628 = vld [vmem:[#allocation2 + $0x48] sm:$0xff]
        %v1629 = vld [vmem:[#allocation2 + $0x50] sm:$0xff]
        %v1630 = vld [vmem:[#allocation2 + $0x58] sm:$0xff]
        %v1631 = vld [vmem:[#allocation2 + $0x60] sm:$0xff]
        %v1632 = vld [vmem:[#allocation2 + $0x68] sm:$0xff]
        %s1633 = scalar_lea.vmem %s1, 24
        %v1634 = vld [vmem:[%s1633] sm:$0xf]
        %v1636 = vsel %vm205, %v1605, 0
        %v1639 = vsel %vm205, %v1606, 0
        %v1642 = vsel %vm205, %v1607, 0
        %v1645 = vsel %vm205, %v1608, 0
        %v1648 = vsel %vm205, %v1609, 0
        %v1651 = vsel %vm205, %v1610, 0
        %v1654 = vsel %vm205, %v1611, 0
        %v1657 = vsel %vm205, %v1612, 0
        %v1660 = vsel %vm205, %v1613, 0
        %v1663 = vsel %vm205, %v1614, 0
        %v1666 = vsel %vm205, %v1615, 0
        %v1669 = vsel %vm205, %v1616, 0
        %v1672 = vsel %vm205, %v1617, 0
        %v1675 = vsel %vm205, %v1618, 0
        %v1678 = vsel %vm248, %v1634, 0
        %1680 = vmatprep.subr.mxu0 0.0
        %1681 = vmatpush1.msra.mxu0 0.0
        %1682 = vmatprep.subr.mxu0 0.0
        %1683 = vmatpush1.msra.mxu0 0.0
        %1684 = vmatprep.subr.mxu0 0.0
        %1685 = vmatpush1.msra.mxu0 0.0
        %1686 = vmatprep.subr.mxu0 0.0
        %1687 = vmatpush1.msra.mxu0 0.0
        %1688 = vmatprep.subr.mxu0 0.0
        %1689 = vmatpush1.msra.mxu0 0.0
        %1690 = vmatprep.subr.mxu0 0.0
        %1691 = vmatpush1.msra.mxu0 0.0
        %1692 = vmatprep.subr.mxu0 0.0
        %1693 = vmatpush1.msra.mxu0 0.0
        %1694 = vmatprep.subr.mxu0 0.0
        %1695 = vmatpush1.msra.mxu0 0.0
        %1696 = vmatprep.subr.mxu0 0.0
        %1697 = vmatpush1.msra.mxu0 0.0
        %1698 = vmatprep.subr.mxu0 0.0
        %1699 = vmatpush1.msra.mxu0 0.0
        %1700 = vmatprep.subr.mxu0 0.0
        %1701 = vmatpush1.msra.mxu0 0.0
        %1702 = vmatprep.subr.mxu0 0.0
        %1703 = vmatpush1.msra.mxu0 0.0
        %1704 = vmatprep.subr.mxu0 0.0
        %1705 = vmatpush1.msra.mxu0 0.0
        %1706 = vmatprep.subr.mxu0 0.0
        %1707 = vmatpush1.msra.mxu0 0.0
        %1708 = vmatprep.subr.mxu0 0.0
        %1709 = vmatpush1.msra.mxu0 0.0
        %1710 = vmatprep.subr.mxu0 0.0
        %1711 = vmatpush1.msra.mxu0 %v1678
        %1712 = vmatprep.subr.mxu0 0.0
        %1713 = vmatpush2.msra.mxu0 0.0
        %1714 = vmatprep.subr.mxu0 0.0
        %1715 = vmatpush2.msra.mxu0 0.0
        %1716 = vmatprep.subr.mxu0 0.0
        %1717 = vmatpush2.msra.mxu0 0.0
        %1718 = vmatprep.subr.mxu0 0.0
        %1719 = vmatpush2.msra.mxu0 0.0
        %1720 = vmatprep.subr.mxu0 0.0
        %1721 = vmatpush2.msra.mxu0 0.0
        %1722 = vmatprep.subr.mxu0 0.0
        %1723 = vmatpush2.msra.mxu0 0.0
        %1724 = vmatprep.subr.mxu0 0.0
        %1725 = vmatpush2.msra.mxu0 0.0
        %1726 = vmatprep.subr.mxu0 0.0
        %1727 = vmatpush2.msra.mxu0 0.0
        %1728 = vmatprep.subr.mxu0 0.0
        %1729 = vmatpush2.msra.mxu0 0.0
        %1730 = vmatprep.subr.mxu0 0.0
        %1731 = vmatpush2.msra.mxu0 0.0
        %1732 = vmatprep.subr.mxu0 0.0
        %1733 = vmatpush2.msra.mxu0 0.0
        %1734 = vmatprep.subr.mxu0 0.0
        %1735 = vmatpush2.msra.mxu0 0.0
        %1736 = vmatprep.subr.mxu0 0.0
        %1737 = vmatpush2.msra.mxu0 0.0
        %1738 = vmatprep.subr.mxu0 0.0
        %1739 = vmatpush2.msra.mxu0 0.0
        %1740 = vmatprep.subr.mxu0 0.0
        %1741 = vmatpush2.msra.mxu0 0.0
        %1742 = vmatprep.subr.mxu0 0.0
        %1743 = vmatpush2.msra.mxu0 0.0
        %1744 = vmatprep.mubr.f32.mxu0 0.0
        %1745 = vmatmul.mubr.f32.gmra.mxu0 %v1636
        %v1746 = vpop.f32.mrf.mxu0
        %v1747 = vadd.f32 0.0, %v1746
        %v1748 = vpop.f32.mrf.mxu0
        %1749 = vmatprep.mubr.f32.mxu0 0.0
        %1750 = vmatmul.mubr.f32.gmra.mxu0 %v1639
        %v1751 = vpop.f32.mrf.mxu0
        %v1752 = vadd.f32 0.0, %v1751
        %v1753 = vpop.f32.mrf.mxu0
        %1754 = vmatprep.mubr.f32.mxu0 0.0
        %1755 = vmatmul.mubr.f32.gmra.mxu0 %v1642
        %v1756 = vpop.f32.mrf.mxu0
        %v1757 = vadd.f32 0.0, %v1756
        %v1758 = vpop.f32.mrf.mxu0
        %1759 = vmatprep.mubr.f32.mxu0 0.0
        %1760 = vmatmul.mubr.f32.gmra.mxu0 %v1645
        %v1761 = vpop.f32.mrf.mxu0
        %v1762 = vadd.f32 0.0, %v1761
        %v1763 = vpop.f32.mrf.mxu0
        %1764 = vmatprep.mubr.f32.mxu0 0.0
        %1765 = vmatmul.mubr.f32.gmra.mxu0 %v1648
        %v1766 = vpop.f32.mrf.mxu0
        %v1767 = vadd.f32 0.0, %v1766
        %v1768 = vpop.f32.mrf.mxu0
        %1769 = vmatprep.mubr.f32.mxu0 0.0
        %1770 = vmatmul.mubr.f32.gmra.mxu0 %v1651
        %v1771 = vpop.f32.mrf.mxu0
        %v1772 = vadd.f32 0.0, %v1771
        %v1773 = vpop.f32.mrf.mxu0
        %1774 = vmatprep.mubr.f32.mxu0 0.0
        %1775 = vmatmul.mubr.f32.gmra.mxu0 %v1654
        %v1776 = vpop.f32.mrf.mxu0
        %v1777 = vadd.f32 0.0, %v1776
        %v1778 = vpop.f32.mrf.mxu0
        %1779 = vmatprep.mubr.f32.mxu0 0.0
        %1780 = vmatmul.mubr.f32.gmra.mxu0 %v1657
        %v1781 = vpop.f32.mrf.mxu0
        %v1782 = vadd.f32 0.0, %v1781
        %v1783 = vpop.f32.mrf.mxu0
        %1784 = vmatprep.mubr.f32.mxu0 0.0
        %1785 = vmatmul.mubr.f32.gmra.mxu0 %v1660
        %v1786 = vpop.f32.mrf.mxu0
        %v1787 = vadd.f32 0.0, %v1786
        %v1788 = vpop.f32.mrf.mxu0
        %1789 = vmatprep.mubr.f32.mxu0 0.0
        %1790 = vmatmul.mubr.f32.gmra.mxu0 %v1663
        %v1791 = vpop.f32.mrf.mxu0
        %v1792 = vadd.f32 0.0, %v1791
        %v1793 = vpop.f32.mrf.mxu0
        %1794 = vmatprep.mubr.f32.mxu0 0.0
        %1795 = vmatmul.mubr.f32.gmra.mxu0 %v1666
        %v1796 = vpop.f32.mrf.mxu0
        %v1797 = vadd.f32 0.0, %v1796
        %v1798 = vpop.f32.mrf.mxu0
        %1799 = vmatprep.mubr.f32.mxu0 0.0
        %1800 = vmatmul.mubr.f32.gmra.mxu0 %v1669
        %v1801 = vpop.f32.mrf.mxu0
        %v1802 = vadd.f32 0.0, %v1801
        %v1803 = vpop.f32.mrf.mxu0
        %1804 = vmatprep.mubr.f32.mxu0 0.0
        %1805 = vmatmul.mubr.f32.gmra.mxu0 %v1672
        %v1806 = vpop.f32.mrf.mxu0
        %v1807 = vadd.f32 0.0, %v1806
        %v1808 = vpop.f32.mrf.mxu0
        %1809 = vmatprep.mubr.f32.mxu0 0.0
        %1810 = vmatmul.mubr.f32.gmra.mxu0 %v1675
        %v1811 = vpop.f32.mrf.mxu0
        %v1812 = vadd.f32 0.0, %v1811
        %v1813 = vpop.f32.mrf.mxu0
        %1814 = vdwg.mxu0
        %v1815 = vadd.f32 %v1619, %v1747
        %v1816 = vadd.f32 %v1620, %v1752
        %v1817 = vadd.f32 %v1621, %v1757
        %v1818 = vadd.f32 %v1622, %v1762
        %v1819 = vadd.f32 %v1623, %v1767
        %v1820 = vadd.f32 %v1624, %v1772
        %v1821 = vadd.f32 %v1625, %v1777
        %v1822 = vadd.f32 %v1626, %v1782
        %v1823 = vadd.f32 %v1627, %v1787
        %v1824 = vadd.f32 %v1628, %v1792
        %v1825 = vadd.f32 %v1629, %v1797
        %v1826 = vadd.f32 %v1630, %v1802
        %v1827 = vadd.f32 %v1631, %v1807
        %v1828 = vadd.f32 %v1632, %v1812
        %1829 = vst [vmem:[#allocation2] sm:$0xff] %v1815
        %1830 = vst [vmem:[#allocation2 + $0x8] sm:$0xff] %v1816
        %1831 = vst [vmem:[#allocation2 + $0x10] sm:$0xff] %v1817
        %1832 = vst [vmem:[#allocation2 + $0x18] sm:$0xff] %v1818
        %1833 = vst [vmem:[#allocation2 + $0x20] sm:$0xff] %v1819
        %1834 = vst [vmem:[#allocation2 + $0x28] sm:$0xff] %v1820
        %1835 = vst [vmem:[#allocation2 + $0x30] sm:$0xff] %v1821
        %1836 = vst [vmem:[#allocation2 + $0x38] sm:$0xff] %v1822
        %1837 = vst [vmem:[#allocation2 + $0x40] sm:$0xff] %v1823
        %1838 = vst [vmem:[#allocation2 + $0x48] sm:$0xff] %v1824
        %1839 = vst [vmem:[#allocation2 + $0x50] sm:$0xff] %v1825
        %1840 = vst [vmem:[#allocation2 + $0x58] sm:$0xff] %v1826
        %1841 = vst [vmem:[#allocation2 + $0x60] sm:$0xff] %v1827
        %1842 = vst [vmem:[#allocation2 + $0x68] sm:$0xff] %v1828
        %v1843 = vld [vmem:[%s155 + $0x21] sm:$0xff]
        %v1844 = vld [vmem:[%s155 + $0x29] sm:$0xff]
        %v1845 = vld [vmem:[%s155 + $0x31] sm:$0xff]
        %v1846 = vld [vmem:[%s155 + $0x39] sm:$0xff]
        %v1847 = vld [vmem:[%s155 + $0x41] sm:$0xff]
        %v1848 = vld [vmem:[%s155 + $0x49] sm:$0xff]
        %v1849 = vld [vmem:[%s155 + $0x51] sm:$0xff]
        %v1850 = vld [vmem:[%s155 + $0x59] sm:$0xff]
        %v1851 = vld [vmem:[%s155 + $0x61] sm:$0xff]
        %v1852 = vld [vmem:[%s155 + $0x69] sm:$0xff]
        %v1853 = vld [vmem:[%s155 + $0x71] sm:$0xff]
        %v1854 = vld [vmem:[%s155 + $0x79] sm:$0xff]
        %v1855 = vld [vmem:[%s155 + $0x81] sm:$0xff]
        %v1856 = vld [vmem:[%s155 + $0x89] sm:$0xff]
        %v1857 = vld [vmem:[#allocation2] sm:$0xff]
        %v1858 = vld [vmem:[#allocation2 + $0x8] sm:$0xff]
        %v1859 = vld [vmem:[#allocation2 + $0x10] sm:$0xff]
        %v1860 = vld [vmem:[#allocation2 + $0x18] sm:$0xff]
        %v1861 = vld [vmem:[#allocation2 + $0x20] sm:$0xff]
        %v1862 = vld [vmem:[#allocation2 + $0x28] sm:$0xff]
        %v1863 = vld [vmem:[#allocation2 + $0x30] sm:$0xff]
        %v1864 = vld [vmem:[#allocation2 + $0x38] sm:$0xff]
        %v1865 = vld [vmem:[#allocation2 + $0x40] sm:$0xff]
        %v1866 = vld [vmem:[#allocation2 + $0x48] sm:$0xff]
        %v1867 = vld [vmem:[#allocation2 + $0x50] sm:$0xff]
        %v1868 = vld [vmem:[#allocation2 + $0x58] sm:$0xff]
        %v1869 = vld [vmem:[#allocation2 + $0x60] sm:$0xff]
        %v1870 = vld [vmem:[#allocation2 + $0x68] sm:$0xff]
        %s1871 = scalar_lea.vmem %s1, 28
        %v1872 = vld [vmem:[%s1871] sm:$0xf]
        %v1874 = vsel %vm205, %v1843, 0
        %v1877 = vsel %vm205, %v1844, 0
        %v1880 = vsel %vm205, %v1845, 0
        %v1883 = vsel %vm205, %v1846, 0
        %v1886 = vsel %vm205, %v1847, 0
        %v1889 = vsel %vm205, %v1848, 0
        %v1892 = vsel %vm205, %v1849, 0
        %v1895 = vsel %vm205, %v1850, 0
        %v1898 = vsel %vm205, %v1851, 0
        %v1901 = vsel %vm205, %v1852, 0
        %v1904 = vsel %vm205, %v1853, 0
        %v1907 = vsel %vm205, %v1854, 0
        %v1910 = vsel %vm205, %v1855, 0
        %v1913 = vsel %vm205, %v1856, 0
        %v1916 = vsel %vm248, %v1872, 0
        %1918 = vmatprep.subr.mxu0 0.0
        %1919 = vmatpush1.msra.mxu0 0.0
        %1920 = vmatprep.subr.mxu0 0.0
        %1921 = vmatpush1.msra.mxu0 0.0
        %1922 = vmatprep.subr.mxu0 0.0
        %1923 = vmatpush1.msra.mxu0 0.0
        %1924 = vmatprep.subr.mxu0 0.0
        %1925 = vmatpush1.msra.mxu0 0.0
        %1926 = vmatprep.subr.mxu0 0.0
        %1927 = vmatpush1.msra.mxu0 0.0
        %1928 = vmatprep.subr.mxu0 0.0
        %1929 = vmatpush1.msra.mxu0 0.0
        %1930 = vmatprep.subr.mxu0 0.0
        %1931 = vmatpush1.msra.mxu0 0.0
        %1932 = vmatprep.subr.mxu0 0.0
        %1933 = vmatpush1.msra.mxu0 0.0
        %1934 = vmatprep.subr.mxu0 0.0
        %1935 = vmatpush1.msra.mxu0 0.0
        %1936 = vmatprep.subr.mxu0 0.0
        %1937 = vmatpush1.msra.mxu0 0.0
        %1938 = vmatprep.subr.mxu0 0.0
        %1939 = vmatpush1.msra.mxu0 0.0
        %1940 = vmatprep.subr.mxu0 0.0
        %1941 = vmatpush1.msra.mxu0 0.0
        %1942 = vmatprep.subr.mxu0 0.0
        %1943 = vmatpush1.msra.mxu0 0.0
        %1944 = vmatprep.subr.mxu0 0.0
        %1945 = vmatpush1.msra.mxu0 0.0
        %1946 = vmatprep.subr.mxu0 0.0
        %1947 = vmatpush1.msra.mxu0 0.0
        %1948 = vmatprep.subr.mxu0 0.0
        %1949 = vmatpush1.msra.mxu0 %v1916
        %1950 = vmatprep.subr.mxu0 0.0
        %1951 = vmatpush2.msra.mxu0 0.0
        %1952 = vmatprep.subr.mxu0 0.0
        %1953 = vmatpush2.msra.mxu0 0.0
        %1954 = vmatprep.subr.mxu0 0.0
        %1955 = vmatpush2.msra.mxu0 0.0
        %1956 = vmatprep.subr.mxu0 0.0
        %1957 = vmatpush2.msra.mxu0 0.0
        %1958 = vmatprep.subr.mxu0 0.0
        %1959 = vmatpush2.msra.mxu0 0.0
        %1960 = vmatprep.subr.mxu0 0.0
        %1961 = vmatpush2.msra.mxu0 0.0
        %1962 = vmatprep.subr.mxu0 0.0
        %1963 = vmatpush2.msra.mxu0 0.0
        %1964 = vmatprep.subr.mxu0 0.0
        %1965 = vmatpush2.msra.mxu0 0.0
        %1966 = vmatprep.subr.mxu0 0.0
        %1967 = vmatpush2.msra.mxu0 0.0
        %1968 = vmatprep.subr.mxu0 0.0
        %1969 = vmatpush2.msra.mxu0 0.0
        %1970 = vmatprep.subr.mxu0 0.0
        %1971 = vmatpush2.msra.mxu0 0.0
        %1972 = vmatprep.subr.mxu0 0.0
        %1973 = vmatpush2.msra.mxu0 0.0
        %1974 = vmatprep.subr.mxu0 0.0
        %1975 = vmatpush2.msra.mxu0 0.0
        %1976 = vmatprep.subr.mxu0 0.0
        %1977 = vmatpush2.msra.mxu0 0.0
        %1978 = vmatprep.subr.mxu0 0.0
        %1979 = vmatpush2.msra.mxu0 0.0
        %1980 = vmatprep.subr.mxu0 0.0
        %1981 = vmatpush2.msra.mxu0 0.0
        %1982 = vmatprep.mubr.f32.mxu0 0.0
        %1983 = vmatmul.mubr.f32.gmra.mxu0 %v1874
        %v1984 = vpop.f32.mrf.mxu0
        %v1985 = vadd.f32 0.0, %v1984
        %v1986 = vpop.f32.mrf.mxu0
        %1987 = vmatprep.mubr.f32.mxu0 0.0
        %1988 = vmatmul.mubr.f32.gmra.mxu0 %v1877
        %v1989 = vpop.f32.mrf.mxu0
        %v1990 = vadd.f32 0.0, %v1989
        %v1991 = vpop.f32.mrf.mxu0
        %1992 = vmatprep.mubr.f32.mxu0 0.0
        %1993 = vmatmul.mubr.f32.gmra.mxu0 %v1880
        %v1994 = vpop.f32.mrf.mxu0
        %v1995 = vadd.f32 0.0, %v1994
        %v1996 = vpop.f32.mrf.mxu0
        %1997 = vmatprep.mubr.f32.mxu0 0.0
        %1998 = vmatmul.mubr.f32.gmra.mxu0 %v1883
        %v1999 = vpop.f32.mrf.mxu0
        %v2000 = vadd.f32 0.0, %v1999
        %v2001 = vpop.f32.mrf.mxu0
        %2002 = vmatprep.mubr.f32.mxu0 0.0
        %2003 = vmatmul.mubr.f32.gmra.mxu0 %v1886
        %v2004 = vpop.f32.mrf.mxu0
        %v2005 = vadd.f32 0.0, %v2004
        %v2006 = vpop.f32.mrf.mxu0
        %2007 = vmatprep.mubr.f32.mxu0 0.0
        %2008 = vmatmul.mubr.f32.gmra.mxu0 %v1889
        %v2009 = vpop.f32.mrf.mxu0
        %v2010 = vadd.f32 0.0, %v2009
        %v2011 = vpop.f32.mrf.mxu0
        %2012 = vmatprep.mubr.f32.mxu0 0.0
        %2013 = vmatmul.mubr.f32.gmra.mxu0 %v1892
        %v2014 = vpop.f32.mrf.mxu0
        %v2015 = vadd.f32 0.0, %v2014
        %v2016 = vpop.f32.mrf.mxu0
        %2017 = vmatprep.mubr.f32.mxu0 0.0
        %2018 = vmatmul.mubr.f32.gmra.mxu0 %v1895
        %v2019 = vpop.f32.mrf.mxu0
        %v2020 = vadd.f32 0.0, %v2019
        %v2021 = vpop.f32.mrf.mxu0
        %2022 = vmatprep.mubr.f32.mxu0 0.0
        %2023 = vmatmul.mubr.f32.gmra.mxu0 %v1898
        %v2024 = vpop.f32.mrf.mxu0
        %v2025 = vadd.f32 0.0, %v2024
        %v2026 = vpop.f32.mrf.mxu0
        %2027 = vmatprep.mubr.f32.mxu0 0.0
        %2028 = vmatmul.mubr.f32.gmra.mxu0 %v1901
        %v2029 = vpop.f32.mrf.mxu0
        %v2030 = vadd.f32 0.0, %v2029
        %v2031 = vpop.f32.mrf.mxu0
        %2032 = vmatprep.mubr.f32.mxu0 0.0
        %2033 = vmatmul.mubr.f32.gmra.mxu0 %v1904
        %v2034 = vpop.f32.mrf.mxu0
        %v2035 = vadd.f32 0.0, %v2034
        %v2036 = vpop.f32.mrf.mxu0
        %2037 = vmatprep.mubr.f32.mxu0 0.0
        %2038 = vmatmul.mubr.f32.gmra.mxu0 %v1907
        %v2039 = vpop.f32.mrf.mxu0
        %v2040 = vadd.f32 0.0, %v2039
        %v2041 = vpop.f32.mrf.mxu0
        %2042 = vmatprep.mubr.f32.mxu0 0.0
        %2043 = vmatmul.mubr.f32.gmra.mxu0 %v1910
        %v2044 = vpop.f32.mrf.mxu0
        %v2045 = vadd.f32 0.0, %v2044
        %v2046 = vpop.f32.mrf.mxu0
        %2047 = vmatprep.mubr.f32.mxu0 0.0
        %2048 = vmatmul.mubr.f32.gmra.mxu0 %v1913
        %v2049 = vpop.f32.mrf.mxu0
        %v2050 = vadd.f32 0.0, %v2049
        %v2051 = vpop.f32.mrf.mxu0
        %2052 = vdwg.mxu0
        %v2053 = vadd.f32 %v1857, %v1985
        %v2054 = vadd.f32 %v1858, %v1990
        %v2055 = vadd.f32 %v1859, %v1995
        %v2056 = vadd.f32 %v1860, %v2000
        %v2057 = vadd.f32 %v1861, %v2005
        %v2058 = vadd.f32 %v1862, %v2010
        %v2059 = vadd.f32 %v1863, %v2015
        %v2060 = vadd.f32 %v1864, %v2020
        %v2061 = vadd.f32 %v1865, %v2025
        %v2062 = vadd.f32 %v1866, %v2030
        %v2063 = vadd.f32 %v1867, %v2035
        %v2064 = vadd.f32 %v1868, %v2040
        %v2065 = vadd.f32 %v1869, %v2045
        %v2066 = vadd.f32 %v1870, %v2050
        %2067 = vst [vmem:[#allocation2] sm:$0xff] %v2053
        %2068 = vst [vmem:[#allocation2 + $0x8] sm:$0xff] %v2054
        %2069 = vst [vmem:[#allocation2 + $0x10] sm:$0xff] %v2055
        %2070 = vst [vmem:[#allocation2 + $0x18] sm:$0xff] %v2056
        %2071 = vst [vmem:[#allocation2 + $0x20] sm:$0xff] %v2057
        %2072 = vst [vmem:[#allocation2 + $0x28] sm:$0xff] %v2058
        %2073 = vst [vmem:[#allocation2 + $0x30] sm:$0xff] %v2059
        %2074 = vst [vmem:[#allocation2 + $0x38] sm:$0xff] %v2060
        %2075 = vst [vmem:[#allocation2 + $0x40] sm:$0xff] %v2061
        %2076 = vst [vmem:[#allocation2 + $0x48] sm:$0xff] %v2062
        %2077 = vst [vmem:[#allocation2 + $0x50] sm:$0xff] %v2063
        %2078 = vst [vmem:[#allocation2 + $0x58] sm:$0xff] %v2064
        %2079 = vst [vmem:[#allocation2 + $0x60] sm:$0xff] %v2065
        %2080 = vst [vmem:[#allocation2 + $0x68] sm:$0xff] %v2066
        %v2081 = vld [vmem:[%s155 + $0x22] sm:$0xff]
        %v2082 = vld [vmem:[%s155 + $0x2a] sm:$0xff]
        %v2083 = vld [vmem:[%s155 + $0x32] sm:$0xff]
        %v2084 = vld [vmem:[%s155 + $0x3a] sm:$0xff]
        %v2085 = vld [vmem:[%s155 + $0x42] sm:$0xff]
        %v2086 = vld [vmem:[%s155 + $0x4a] sm:$0xff]
        %v2087 = vld [vmem:[%s155 + $0x52] sm:$0xff]
        %v2088 = vld [vmem:[%s155 + $0x5a] sm:$0xff]
        %v2089 = vld [vmem:[%s155 + $0x62] sm:$0xff]
        %v2090 = vld [vmem:[%s155 + $0x6a] sm:$0xff]
        %v2091 = vld [vmem:[%s155 + $0x72] sm:$0xff]
        %v2092 = vld [vmem:[%s155 + $0x7a] sm:$0xff]
        %v2093 = vld [vmem:[%s155 + $0x82] sm:$0xff]
        %v2094 = vld [vmem:[%s155 + $0x8a] sm:$0xff]
        %v2095 = vld [vmem:[#allocation2] sm:$0xff]
        %v2096 = vld [vmem:[#allocation2 + $0x8] sm:$0xff]
        %v2097 = vld [vmem:[#allocation2 + $0x10] sm:$0xff]
        %v2098 = vld [vmem:[#allocation2 + $0x18] sm:$0xff]
        %v2099 = vld [vmem:[#allocation2 + $0x20] sm:$0xff]
        %v2100 = vld [vmem:[#allocation2 + $0x28] sm:$0xff]
        %v2101 = vld [vmem:[#allocation2 + $0x30] sm:$0xff]
        %v2102 = vld [vmem:[#allocation2 + $0x38] sm:$0xff]
        %v2103 = vld [vmem:[#allocation2 + $0x40] sm:$0xff]
        %v2104 = vld [vmem:[#allocation2 + $0x48] sm:$0xff]
        %v2105 = vld [vmem:[#allocation2 + $0x50] sm:$0xff]
        %v2106 = vld [vmem:[#allocation2 + $0x58] sm:$0xff]
        %v2107 = vld [vmem:[#allocation2 + $0x60] sm:$0xff]
        %v2108 = vld [vmem:[#allocation2 + $0x68] sm:$0xff]
        %s2109 = scalar_lea.vmem %s1, 32
        %v2110 = vld [vmem:[%s2109] sm:$0xf]
        %v2112 = vsel %vm205, %v2081, 0
        %v2115 = vsel %vm205, %v2082, 0
        %v2118 = vsel %vm205, %v2083, 0
        %v2121 = vsel %vm205, %v2084, 0
        %v2124 = vsel %vm205, %v2085, 0
        %v2127 = vsel %vm205, %v2086, 0
        %v2130 = vsel %vm205, %v2087, 0
        %v2133 = vsel %vm205, %v2088, 0
        %v2136 = vsel %vm205, %v2089, 0
        %v2139 = vsel %vm205, %v2090, 0
        %v2142 = vsel %vm205, %v2091, 0
        %v2145 = vsel %vm205, %v2092, 0
        %v2148 = vsel %vm205, %v2093, 0
        %v2151 = vsel %vm205, %v2094, 0
        %v2154 = vsel %vm248, %v2110, 0
        %2156 = vmatprep.subr.mxu0 0.0
        %2157 = vmatpush1.msra.mxu0 0.0
        %2158 = vmatprep.subr.mxu0 0.0
        %2159 = vmatpush1.msra.mxu0 0.0
        %2160 = vmatprep.subr.mxu0 0.0
        %2161 = vmatpush1.msra.mxu0 0.0
        %2162 = vmatprep.subr.mxu0 0.0
        %2163 = vmatpush1.msra.mxu0 0.0
        %2164 = vmatprep.subr.mxu0 0.0
        %2165 = vmatpush1.msra.mxu0 0.0
        %2166 = vmatprep.subr.mxu0 0.0
        %2167 = vmatpush1.msra.mxu0 0.0
        %2168 = vmatprep.subr.mxu0 0.0
        %2169 = vmatpush1.msra.mxu0 0.0
        %2170 = vmatprep.subr.mxu0 0.0
        %2171 = vmatpush1.msra.mxu0 0.0
        %2172 = vmatprep.subr.mxu0 0.0
        %2173 = vmatpush1.msra.mxu0 0.0
        %2174 = vmatprep.subr.mxu0 0.0
        %2175 = vmatpush1.msra.mxu0 0.0
        %2176 = vmatprep.subr.mxu0 0.0
        %2177 = vmatpush1.msra.mxu0 0.0
        %2178 = vmatprep.subr.mxu0 0.0
        %2179 = vmatpush1.msra.mxu0 0.0
        %2180 = vmatprep.subr.mxu0 0.0
        %2181 = vmatpush1.msra.mxu0 0.0
        %2182 = vmatprep.subr.mxu0 0.0
        %2183 = vmatpush1.msra.mxu0 0.0
        %2184 = vmatprep.subr.mxu0 0.0
        %2185 = vmatpush1.msra.mxu0 0.0
        %2186 = vmatprep.subr.mxu0 0.0
        %2187 = vmatpush1.msra.mxu0 %v2154
        %2188 = vmatprep.subr.mxu0 0.0
        %2189 = vmatpush2.msra.mxu0 0.0
        %2190 = vmatprep.subr.mxu0 0.0
        %2191 = vmatpush2.msra.mxu0 0.0
        %2192 = vmatprep.subr.mxu0 0.0
        %2193 = vmatpush2.msra.mxu0 0.0
        %2194 = vmatprep.subr.mxu0 0.0
        %2195 = vmatpush2.msra.mxu0 0.0
        %2196 = vmatprep.subr.mxu0 0.0
        %2197 = vmatpush2.msra.mxu0 0.0
        %2198 = vmatprep.subr.mxu0 0.0
        %2199 = vmatpush2.msra.mxu0 0.0
        %2200 = vmatprep.subr.mxu0 0.0
        %2201 = vmatpush2.msra.mxu0 0.0
        %2202 = vmatprep.subr.mxu0 0.0
        %2203 = vmatpush2.msra.mxu0 0.0
        %2204 = vmatprep.subr.mxu0 0.0
        %2205 = vmatpush2.msra.mxu0 0.0
        %2206 = vmatprep.subr.mxu0 0.0
        %2207 = vmatpush2.msra.mxu0 0.0
        %2208 = vmatprep.subr.mxu0 0.0
        %2209 = vmatpush2.msra.mxu0 0.0
        %2210 = vmatprep.subr.mxu0 0.0
        %2211 = vmatpush2.msra.mxu0 0.0
        %2212 = vmatprep.subr.mxu0 0.0
        %2213 = vmatpush2.msra.mxu0 0.0
        %2214 = vmatprep.subr.mxu0 0.0
        %2215 = vmatpush2.msra.mxu0 0.0
        %2216 = vmatprep.subr.mxu0 0.0
        %2217 = vmatpush2.msra.mxu0 0.0
        %2218 = vmatprep.subr.mxu0 0.0
        %2219 = vmatpush2.msra.mxu0 0.0
        %2220 = vmatprep.mubr.f32.mxu0 0.0
        %2221 = vmatmul.mubr.f32.gmra.mxu0 %v2112
        %v2222 = vpop.f32.mrf.mxu0
        %v2223 = vadd.f32 0.0, %v2222
        %v2224 = vpop.f32.mrf.mxu0
        %2225 = vmatprep.mubr.f32.mxu0 0.0
        %2226 = vmatmul.mubr.f32.gmra.mxu0 %v2115
        %v2227 = vpop.f32.mrf.mxu0
        %v2228 = vadd.f32 0.0, %v2227
        %v2229 = vpop.f32.mrf.mxu0
        %2230 = vmatprep.mubr.f32.mxu0 0.0
        %2231 = vmatmul.mubr.f32.gmra.mxu0 %v2118
        %v2232 = vpop.f32.mrf.mxu0
        %v2233 = vadd.f32 0.0, %v2232
        %v2234 = vpop.f32.mrf.mxu0
        %2235 = vmatprep.mubr.f32.mxu0 0.0
        %2236 = vmatmul.mubr.f32.gmra.mxu0 %v2121
        %v2237 = vpop.f32.mrf.mxu0
        %v2238 = vadd.f32 0.0, %v2237
        %v2239 = vpop.f32.mrf.mxu0
        %2240 = vmatprep.mubr.f32.mxu0 0.0
        %2241 = vmatmul.mubr.f32.gmra.mxu0 %v2124
        %v2242 = vpop.f32.mrf.mxu0
        %v2243 = vadd.f32 0.0, %v2242
        %v2244 = vpop.f32.mrf.mxu0
        %2245 = vmatprep.mubr.f32.mxu0 0.0
        %2246 = vmatmul.mubr.f32.gmra.mxu0 %v2127
        %v2247 = vpop.f32.mrf.mxu0
        %v2248 = vadd.f32 0.0, %v2247
        %v2249 = vpop.f32.mrf.mxu0
        %2250 = vmatprep.mubr.f32.mxu0 0.0
        %2251 = vmatmul.mubr.f32.gmra.mxu0 %v2130
        %v2252 = vpop.f32.mrf.mxu0
        %v2253 = vadd.f32 0.0, %v2252
        %v2254 = vpop.f32.mrf.mxu0
        %2255 = vmatprep.mubr.f32.mxu0 0.0
        %2256 = vmatmul.mubr.f32.gmra.mxu0 %v2133
        %v2257 = vpop.f32.mrf.mxu0
        %v2258 = vadd.f32 0.0, %v2257
        %v2259 = vpop.f32.mrf.mxu0
        %2260 = vmatprep.mubr.f32.mxu0 0.0
        %2261 = vmatmul.mubr.f32.gmra.mxu0 %v2136
        %v2262 = vpop.f32.mrf.mxu0
        %v2263 = vadd.f32 0.0, %v2262
        %v2264 = vpop.f32.mrf.mxu0
        %2265 = vmatprep.mubr.f32.mxu0 0.0
        %2266 = vmatmul.mubr.f32.gmra.mxu0 %v2139
        %v2267 = vpop.f32.mrf.mxu0
        %v2268 = vadd.f32 0.0, %v2267
        %v2269 = vpop.f32.mrf.mxu0
        %2270 = vmatprep.mubr.f32.mxu0 0.0
        %2271 = vmatmul.mubr.f32.gmra.mxu0 %v2142
        %v2272 = vpop.f32.mrf.mxu0
        %v2273 = vadd.f32 0.0, %v2272
        %v2274 = vpop.f32.mrf.mxu0
        %2275 = vmatprep.mubr.f32.mxu0 0.0
        %2276 = vmatmul.mubr.f32.gmra.mxu0 %v2145
        %v2277 = vpop.f32.mrf.mxu0
        %v2278 = vadd.f32 0.0, %v2277
        %v2279 = vpop.f32.mrf.mxu0
        %2280 = vmatprep.mubr.f32.mxu0 0.0
        %2281 = vmatmul.mubr.f32.gmra.mxu0 %v2148
        %v2282 = vpop.f32.mrf.mxu0
        %v2283 = vadd.f32 0.0, %v2282
        %v2284 = vpop.f32.mrf.mxu0
        %2285 = vmatprep.mubr.f32.mxu0 0.0
        %2286 = vmatmul.mubr.f32.gmra.mxu0 %v2151
        %v2287 = vpop.f32.mrf.mxu0
        %v2288 = vadd.f32 0.0, %v2287
        %v2289 = vpop.f32.mrf.mxu0
        %2290 = vdwg.mxu0
        %v2291 = vadd.f32 %v2095, %v2223
        %v2292 = vadd.f32 %v2096, %v2228
        %v2293 = vadd.f32 %v2097, %v2233
        %v2294 = vadd.f32 %v2098, %v2238
        %v2295 = vadd.f32 %v2099, %v2243
        %v2296 = vadd.f32 %v2100, %v2248
        %v2297 = vadd.f32 %v2101, %v2253
        %v2298 = vadd.f32 %v2102, %v2258
        %v2299 = vadd.f32 %v2103, %v2263
        %v2300 = vadd.f32 %v2104, %v2268
        %v2301 = vadd.f32 %v2105, %v2273
        %v2302 = vadd.f32 %v2106, %v2278
        %v2303 = vadd.f32 %v2107, %v2283
        %v2304 = vadd.f32 %v2108, %v2288
        %2305 = vst [vmem:[#allocation2] sm:$0xff] %v2291
        %2306 = vst [vmem:[#allocation2 + $0x8] sm:$0xff] %v2292
        %2307 = vst [vmem:[#allocation2 + $0x10] sm:$0xff] %v2293
        %2308 = vst [vmem:[#allocation2 + $0x18] sm:$0xff] %v2294
        %2309 = vst [vmem:[#allocation2 + $0x20] sm:$0xff] %v2295
        %2310 = vst [vmem:[#allocation2 + $0x28] sm:$0xff] %v2296
        %2311 = vst [vmem:[#allocation2 + $0x30] sm:$0xff] %v2297
        %2312 = vst [vmem:[#allocation2 + $0x38] sm:$0xff] %v2298
        %2313 = vst [vmem:[#allocation2 + $0x40] sm:$0xff] %v2299
        %2314 = vst [vmem:[#allocation2 + $0x48] sm:$0xff] %v2300
        %2315 = vst [vmem:[#allocation2 + $0x50] sm:$0xff] %v2301
        %2316 = vst [vmem:[#allocation2 + $0x58] sm:$0xff] %v2302
        %2317 = vst [vmem:[#allocation2 + $0x60] sm:$0xff] %v2303
        %2318 = vst [vmem:[#allocation2 + $0x68] sm:$0xff] %v2304
        %v2319 = vld [vmem:[#allocation2] sm:$0xff]
        %v2320 = vld [vmem:[#allocation2 + $0x8] sm:$0xff]
        %v2321 = vld [vmem:[#allocation2 + $0x10] sm:$0xff]
        %v2322 = vld [vmem:[#allocation2 + $0x18] sm:$0xff]
        %v2323 = vld [vmem:[#allocation2 + $0x20] sm:$0xff]
        %v2324 = vld [vmem:[#allocation2 + $0x28] sm:$0xff]
        %v2325 = vld [vmem:[#allocation2 + $0x30] sm:$0xff]
        %v2326 = vld [vmem:[#allocation2 + $0x38] sm:$0xff]
        %v2327 = vld [vmem:[#allocation2 + $0x40] sm:$0xff]
        %v2328 = vld [vmem:[#allocation2 + $0x48] sm:$0xff]
        %v2329 = vld [vmem:[#allocation2 + $0x50] sm:$0xff]
        %v2330 = vld [vmem:[#allocation2 + $0x58] sm:$0xff]
        %v2331 = vld [vmem:[#allocation2 + $0x60] sm:$0xff]
        %v2332 = vld [vmem:[#allocation2 + $0x68] sm:$0xff]
        %v2333 = vlaneseq
        %v2334 = vshrl.u32 %v2333, 7
        %v2335 = vadd.s32 %v2334, 8
        %v2336 = vadd.s32 %v2334, 16
        %v2337 = vadd.s32 %v2334, 24
        %v2338 = vadd.s32 %v2334, 32
        %v2339 = vadd.s32 %v2334, 40
        %v2340 = vadd.s32 %v2334, 48
        %v2341 = vadd.s32 %v2334, 56
        %v2342 = vadd.s32 %v2334, 64
        %v2343 = vadd.s32 %v2334, 72
        %v2344 = vadd.s32 %v2334, 80
        %v2345 = vadd.s32 %v2334, 88
        %v2346 = vadd.s32 %v2334, 96
        %v2347 = vadd.s32 %v2334, 104
        %vm2348 = vcmp.lt.s32.totalorder %v2334, 0
        %v2349 = vsub.s32 0, %v2334
        %v2350 = vsel %vm2348, %v2349, %v2334
        %v2351 = vshrl.u32 %v2350, 4
        %v2352 = vand.u32 %v2350, 15
        %v2353 = vsub.s32 0, %v2352
        %v2354 = vsel %vm2348, %v2353, %v2352
        %vm2355 = vcmp.lt.s32.totalorder %v2335, 0
        %v2356 = vsub.s32 0, %v2335
        %v2357 = vsel %vm2355, %v2356, %v2335
        %v2358 = vshrl.u32 %v2357, 4
        %v2359 = vand.u32 %v2357, 15
        %v2360 = vsub.s32 0, %v2359
        %v2361 = vsel %vm2355, %v2360, %v2359
        %vm2362 = vcmp.lt.s32.totalorder %v2336, 0
        %v2363 = vsub.s32 0, %v2336
        %v2364 = vsel %vm2362, %v2363, %v2336
        %v2365 = vshrl.u32 %v2364, 4
        %v2366 = vand.u32 %v2364, 15
        %v2367 = vsub.s32 0, %v2366
        %v2368 = vsel %vm2362, %v2367, %v2366
        %vm2369 = vcmp.lt.s32.totalorder %v2337, 0
        %v2370 = vsub.s32 0, %v2337
        %v2371 = vsel %vm2369, %v2370, %v2337
        %v2372 = vshrl.u32 %v2371, 4
        %v2373 = vand.u32 %v2371, 15
        %v2374 = vsub.s32 0, %v2373
        %v2375 = vsel %vm2369, %v2374, %v2373
        %vm2376 = vcmp.lt.s32.totalorder %v2338, 0
        %v2377 = vsub.s32 0, %v2338
        %v2378 = vsel %vm2376, %v2377, %v2338
        %v2379 = vshrl.u32 %v2378, 4
        %v2380 = vand.u32 %v2378, 15
        %v2381 = vsub.s32 0, %v2380
        %v2382 = vsel %vm2376, %v2381, %v2380
        %vm2383 = vcmp.lt.s32.totalorder %v2339, 0
        %v2384 = vsub.s32 0, %v2339
        %v2385 = vsel %vm2383, %v2384, %v2339
        %v2386 = vshrl.u32 %v2385, 4
        %v2387 = vand.u32 %v2385, 15
        %v2388 = vsub.s32 0, %v2387
        %v2389 = vsel %vm2383, %v2388, %v2387
        %vm2390 = vcmp.lt.s32.totalorder %v2340, 0
        %v2391 = vsub.s32 0, %v2340
        %v2392 = vsel %vm2390, %v2391, %v2340
        %v2393 = vshrl.u32 %v2392, 4
        %v2394 = vand.u32 %v2392, 15
        %v2395 = vsub.s32 0, %v2394
        %v2396 = vsel %vm2390, %v2395, %v2394
        %vm2397 = vcmp.lt.s32.totalorder %v2341, 0
        %v2398 = vsub.s32 0, %v2341
        %v2399 = vsel %vm2397, %v2398, %v2341
        %v2400 = vshrl.u32 %v2399, 4
        %v2401 = vand.u32 %v2399, 15
        %v2402 = vsub.s32 0, %v2401
        %v2403 = vsel %vm2397, %v2402, %v2401
        %vm2404 = vcmp.lt.s32.totalorder %v2342, 0
        %v2405 = vsub.s32 0, %v2342
        %v2406 = vsel %vm2404, %v2405, %v2342
        %v2407 = vshrl.u32 %v2406, 4
        %v2408 = vand.u32 %v2406, 15
        %v2409 = vsub.s32 0, %v2408
        %v2410 = vsel %vm2404, %v2409, %v2408
        %vm2411 = vcmp.lt.s32.totalorder %v2343, 0
        %v2412 = vsub.s32 0, %v2343
        %v2413 = vsel %vm2411, %v2412, %v2343
        %v2414 = vshrl.u32 %v2413, 4
        %v2415 = vand.u32 %v2413, 15
        %v2416 = vsub.s32 0, %v2415
        %v2417 = vsel %vm2411, %v2416, %v2415
        %vm2418 = vcmp.lt.s32.totalorder %v2344, 0
        %v2419 = vsub.s32 0, %v2344
        %v2420 = vsel %vm2418, %v2419, %v2344
        %v2421 = vshrl.u32 %v2420, 4
        %v2422 = vand.u32 %v2420, 15
        %v2423 = vsub.s32 0, %v2422
        %v2424 = vsel %vm2418, %v2423, %v2422
        %vm2425 = vcmp.lt.s32.totalorder %v2345, 0
        %v2426 = vsub.s32 0, %v2345
        %v2427 = vsel %vm2425, %v2426, %v2345
        %v2428 = vshrl.u32 %v2427, 4
        %v2429 = vand.u32 %v2427, 15
        %v2430 = vsub.s32 0, %v2429
        %v2431 = vsel %vm2425, %v2430, %v2429
        %vm2432 = vcmp.lt.s32.totalorder %v2346, 0
        %v2433 = vsub.s32 0, %v2346
        %v2434 = vsel %vm2432, %v2433, %v2346
        %v2435 = vshrl.u32 %v2434, 4
        %v2436 = vand.u32 %v2434, 15
        %v2437 = vsub.s32 0, %v2436
        %v2438 = vsel %vm2432, %v2437, %v2436
        %vm2439 = vcmp.lt.s32.totalorder %v2347, 0
        %v2440 = vsub.s32 0, %v2347
        %v2441 = vsel %vm2439, %v2440, %v2347
        %v2442 = vshrl.u32 %v2441, 4
        %v2443 = vand.u32 %v2441, 15
        %v2444 = vsub.s32 0, %v2443
        %v2445 = vsel %vm2439, %v2444, %v2443
        %vm2446 = vcmp.ne.s32.totalorder %v2354, 0
        %vm2447 = vcmp.ne.s32.totalorder %v2361, 0
        %vm2448 = vcmp.ne.s32.totalorder %v2368, 0
        %vm2449 = vcmp.ne.s32.totalorder %v2375, 0
        %vm2450 = vcmp.ne.s32.totalorder %v2382, 0
        %vm2451 = vcmp.ne.s32.totalorder %v2389, 0
        %vm2452 = vcmp.ne.s32.totalorder %v2396, 0
        %vm2453 = vcmp.ne.s32.totalorder %v2403, 0
        %vm2454 = vcmp.ne.s32.totalorder %v2410, 0
        %vm2455 = vcmp.ne.s32.totalorder %v2417, 0
        %vm2456 = vcmp.ne.s32.totalorder %v2424, 0
        %vm2457 = vcmp.ne.s32.totalorder %v2431, 0
        %vm2458 = vcmp.ne.s32.totalorder %v2438, 0
        %vm2459 = vcmp.ne.s32.totalorder %v2445, 0
        %vm2460 = vcmp.lt.s32.totalorder %v2354, 0
        %vm2461 = vcmp.lt.s32.totalorder %v2361, 0
        %vm2462 = vcmp.lt.s32.totalorder %v2368, 0
        %vm2463 = vcmp.lt.s32.totalorder %v2375, 0
        %vm2464 = vcmp.lt.s32.totalorder %v2382, 0
        %vm2465 = vcmp.lt.s32.totalorder %v2389, 0
        %vm2466 = vcmp.lt.s32.totalorder %v2396, 0
        %vm2467 = vcmp.lt.s32.totalorder %v2403, 0
        %vm2468 = vcmp.lt.s32.totalorder %v2410, 0
        %vm2469 = vcmp.lt.s32.totalorder %v2417, 0
        %vm2470 = vcmp.lt.s32.totalorder %v2424, 0
        %vm2471 = vcmp.lt.s32.totalorder %v2431, 0
        %vm2472 = vcmp.lt.s32.totalorder %v2438, 0
        %vm2473 = vcmp.lt.s32.totalorder %v2445, 0
        %vm2474 = vmand %vm2460, %vm2446
        %vm2475 = vmand %vm2461, %vm2447
        %vm2476 = vmand %vm2462, %vm2448
        %vm2477 = vmand %vm2463, %vm2449
        %vm2478 = vmand %vm2464, %vm2450
        %vm2479 = vmand %vm2465, %vm2451
        %vm2480 = vmand %vm2466, %vm2452
        %vm2481 = vmand %vm2467, %vm2453
        %vm2482 = vmand %vm2468, %vm2454
        %vm2483 = vmand %vm2469, %vm2455
        %vm2484 = vmand %vm2470, %vm2456
        %vm2485 = vmand %vm2471, %vm2457
        %vm2486 = vmand %vm2472, %vm2458
        %vm2487 = vmand %vm2473, %vm2459
        %v2488 = vadd.s32 %v2354, 16
        %v2489 = vadd.s32 %v2361, 16
        %v2490 = vadd.s32 %v2368, 16
        %v2491 = vadd.s32 %v2375, 16
        %v2492 = vadd.s32 %v2382, 16
        %v2493 = vadd.s32 %v2389, 16
        %v2494 = vadd.s32 %v2396, 16
        %v2495 = vadd.s32 %v2403, 16
        %v2496 = vadd.s32 %v2410, 16
        %v2497 = vadd.s32 %v2417, 16
        %v2498 = vadd.s32 %v2424, 16
        %v2499 = vadd.s32 %v2431, 16
        %v2500 = vadd.s32 %v2438, 16
        %v2501 = vadd.s32 %v2445, 16
        %v2502 = vsel %vm2474, %v2488, %v2354
        %v2503 = vsel %vm2475, %v2489, %v2361
        %v2504 = vsel %vm2476, %v2490, %v2368
        %v2505 = vsel %vm2477, %v2491, %v2375
        %v2506 = vsel %vm2478, %v2492, %v2382
        %v2507 = vsel %vm2479, %v2493, %v2389
        %v2508 = vsel %vm2480, %v2494, %v2396
        %v2509 = vsel %vm2481, %v2495, %v2403
        %v2510 = vsel %vm2482, %v2496, %v2410
        %v2511 = vsel %vm2483, %v2497, %v2417
        %v2512 = vsel %vm2484, %v2498, %v2424
        %v2513 = vsel %vm2485, %v2499, %v2431
        %v2514 = vsel %vm2486, %v2500, %v2438
        %v2515 = vsel %vm2487, %v2501, %v2445
        %vm2516 = vcmp.lt.s32.totalorder %v2502, 14
        %vm2517 = vcmp.lt.s32.totalorder %v2503, 14
        %vm2518 = vcmp.lt.s32.totalorder %v2504, 14
        %vm2519 = vcmp.lt.s32.totalorder %v2505, 14
        %vm2520 = vcmp.lt.s32.totalorder %v2506, 14
        %vm2521 = vcmp.lt.s32.totalorder %v2507, 14
        %vm2522 = vcmp.lt.s32.totalorder %v2508, 14
        %vm2523 = vcmp.lt.s32.totalorder %v2509, 14
        %vm2524 = vcmp.lt.s32.totalorder %v2510, 14
        %vm2525 = vcmp.lt.s32.totalorder %v2511, 14
        %vm2526 = vcmp.lt.s32.totalorder %v2512, 14
        %vm2527 = vcmp.lt.s32.totalorder %v2513, 14
        %vm2528 = vcmp.lt.s32.totalorder %v2514, 14
        %vm2529 = vcmp.lt.s32.totalorder %v2515, 14
        %v2530 = vsel %vm2516, %v2319, 0.0
        %v2531 = vsel %vm2517, %v2320, 0.0
        %v2532 = vsel %vm2518, %v2321, 0.0
        %v2533 = vsel %vm2519, %v2322, 0.0
        %v2534 = vsel %vm2520, %v2323, 0.0
        %v2535 = vsel %vm2521, %v2324, 0.0
        %v2536 = vsel %vm2522, %v2325, 0.0
        %v2537 = vsel %vm2523, %v2326, 0.0
        %v2538 = vsel %vm2524, %v2327, 0.0
        %v2539 = vsel %vm2525, %v2328, 0.0
        %v2540 = vsel %vm2526, %v2329, 0.0
        %v2541 = vsel %vm2527, %v2330, 0.0
        %v2542 = vsel %vm2528, %v2331, 0.0
        %v2543 = vsel %vm2529, %v2332, 0.0
        %v2544 = vld [vmem:[#allocation3] sm:$0x1]
        %v2545 = vadd.f32 %v2530, %v2531
        %v2546 = vadd.f32 %v2545, %v2532
        %v2547 = vadd.f32 %v2546, %v2533
        %v2548 = vadd.f32 %v2547, %v2534
        %v2549 = vadd.f32 %v2548, %v2535
        %v2550 = vadd.f32 %v2549, %v2536
        %v2551 = vadd.f32 %v2550, %v2537
        %v2552 = vadd.f32 %v2551, %v2538
        %v2553 = vadd.f32 %v2552, %v2539
        %v2554 = vadd.f32 %v2553, %v2540
        %v2555 = vadd.f32 %v2554, %v2541
        %v2556 = vadd.f32 %v2555, %v2542
        %v2557 = vadd.f32 %v2556, %v2543
        %v2558 = vrot.slane %v2557, 4
        %v2559 = vadd.f32 %v2557, %v2558
        %v2560 = vrot.slane %v2559, 2
        %v2561 = vadd.f32 %v2559, %v2560
        %v2562 = vrot.slane %v2561, 1
        %v2563 = vadd.f32 %v2561, %v2562
        %v2564 = vadd.f32 %v2544, %v2563
        %2565 = vst [vmem:[#allocation3] sm:$0x1] %v2564
        %v2566 = vld [vmem:[#allocation5] sm:$0x1]
        %v2567 = vmul.f32 %v2530, %v2530
        %v2568 = vmul.f32 %v2531, %v2531
        %v2569 = vmul.f32 %v2532, %v2532
        %v2570 = vmul.f32 %v2533, %v2533
        %v2571 = vmul.f32 %v2534, %v2534
        %v2572 = vmul.f32 %v2535, %v2535
        %v2573 = vmul.f32 %v2536, %v2536
        %v2574 = vmul.f32 %v2537, %v2537
        %v2575 = vmul.f32 %v2538, %v2538
        %v2576 = vmul.f32 %v2539, %v2539
        %v2577 = vmul.f32 %v2540, %v2540
        %v2578 = vmul.f32 %v2541, %v2541
        %v2579 = vmul.f32 %v2542, %v2542
        %v2580 = vmul.f32 %v2543, %v2543
        %v2581 = vadd.f32 %v2567, %v2568
        %v2582 = vadd.f32 %v2581, %v2569
        %v2583 = vadd.f32 %v2582, %v2570
        %v2584 = vadd.f32 %v2583, %v2571
        %v2585 = vadd.f32 %v2584, %v2572
        %v2586 = vadd.f32 %v2585, %v2573
        %v2587 = vadd.f32 %v2586, %v2574
        %v2588 = vadd.f32 %v2587, %v2575
        %v2589 = vadd.f32 %v2588, %v2576
        %v2590 = vadd.f32 %v2589, %v2577
        %v2591 = vadd.f32 %v2590, %v2578
        %v2592 = vadd.f32 %v2591, %v2579
        %v2593 = vadd.f32 %v2592, %v2580
        %v2594 = vrot.slane %v2593, 4
        %v2595 = vadd.f32 %v2593, %v2594
        %v2596 = vrot.slane %v2595, 2
        %v2597 = vadd.f32 %v2595, %v2596
        %v2598 = vrot.slane %v2597, 1
        %v2599 = vadd.f32 %v2597, %v2598
        %v2600 = vadd.f32 %v2566, %v2599
        %2601 = vst [vmem:[#allocation5] sm:$0x1] %v2600
        // Predicated region
        $region33: #{tpu_custom_call.1} parent=27 // pred_check
          %p2602 = pneg %p77
        $region34: #{tpu_custom_call.1} parent=27 // pred_check_branch
          %2604 = sbr.rel (%p2602) target = $region36
        $region35: #{tpu_custom_call.1} parent=27 // pred_region
          %s2606 = ssub.s32 16, 16
          %2607 = vsyncadd [#allocation4], %s2606
          %s2609 = sshll.u32 [#allocation3], 4
          %s2610 = int_to_ptr.vmem [resolvable:$true] %s2609
          %2612 = dma.vmem_to_hbm [thread:$0]  %s2610, 16, %s2, [#allocation4]
        $region36: #{tpu_custom_call.1} parent=27 // pred_fallthru
          _
        // Predicated region
        $region37: #{tpu_custom_call.1} parent=27 // pred_check
          %p2613 = pneg %p98
        $region38: #{tpu_custom_call.1} parent=27 // pred_check_branch
          %2615 = sbr.rel (%p2613) target = $region40
        $region39: #{tpu_custom_call.1} parent=27 // pred_region
          %s2617 = ssub.s32 16, 16
          %2618 = vsyncadd [#allocation6], %s2617
          %s2620 = sshll.u32 [#allocation5], 4
          %s2621 = int_to_ptr.vmem [resolvable:$true] %s2620
          %2623 = dma.vmem_to_hbm [thread:$0]  %s2621, 16, %s3, [#allocation6]
        $region40: #{tpu_custom_call.1} parent=27 // pred_fallthru
          _
        // Predicated region
        $region41: #{tpu_custom_call.1} parent=27 // pred_check
          %p2624 = pneg %p77
        $region42: #{tpu_custom_call.1} parent=27 // pred_check_branch
          %2626 = sbr.rel (%p2624) target = $region44
        $region43: #{tpu_custom_call.1} parent=27 // pred_region
          %2627 = dma.done [#allocation4], 16
        $region44: #{tpu_custom_call.1} parent=27 // pred_fallthru
          _
        // Predicated region
        $region45: #{tpu_custom_call.1} parent=27 // pred_check
          %p2628 = pneg %p98
        $region46: #{tpu_custom_call.1} parent=27 // pred_check_branch
          %2630 = sbr.rel (%p2628) target = $region48
        $region47: #{tpu_custom_call.1} parent=27 // pred_region
          %2631 = dma.done [#allocation6], 16
        $region48: #{tpu_custom_call.1} parent=27 // pred_fallthru
          _
      $region28: #{tpu_custom_call.1} parent=5 // pred_fallthru
        _
      %p2632 = scmp.le.s32.totalorder 2, %s12
      // Predicated region
      $region49: #{tpu_custom_call.1} parent=5 // pred_check
        %p2633 = pneg %p2632
      $region50: #{tpu_custom_call.1} parent=5 // pred_check_branch
        %2635 = sbr.rel (%p2633) target = $region52
      $region51: #{tpu_custom_call.1} parent=5 // pred_region
        %s2636 = ssub.s32 %s12, 2
      $region52: #{tpu_custom_call.1} parent=5 // pred_fallthru
        _
    $region6: #{tpu_custom_call.1} parent=1 // loop_footer
      %s16 = sadd.s32 1, %s12
    $region7: #{tpu_custom_call.1} parent=1 // loop_footer_branch
      %11 = sbr.rel target = $region3
    $region8: #{tpu_custom_call.1} parent=1 // loop_exit
      _
    %2637 = vsyncpa [#allocation4], 1
    %s2638 = scalar_lea.sflag [#allocation4], 1
    %2639 = vsyncpa %s2638, 1
    %2640 = vsyncpa [#allocation6], 1

</llo_original>
